<compile_context>
chip_gen: v7x
topology: tpu7x:2x2x1
jax: 0.10.0
libtpu: 0.0.40
codegen_flags: <defaults>
</compile_context>

<pallas_src>
import functools

import jax
import jax.numpy as jnp
import numpy as np
from jax.experimental import pallas as pl
from jax.experimental.pallas import tpu as pltpu


def _round_up(x, m):
    return (x + m - 1) // m * m


def _geom(h, w):
    """Static layout geometry shared by the XLA prep, weight packing and kernel."""
    assert h % 4 == 0 and w % 4 == 0
    h2, w2 = h // 4, w // 4              # pooled2 (and per-parity pooled1) grid
    rs = w2 + 2                          # lane row stride (2 garbage cols per row)
    l_out = h2 * rs                      # flat length of one parity / of pooled2
    l_pad = _round_up(l_out, 128)        # lane-aligned per-parity chunk of the conv1 slab
    shp = _round_up(2 * rs + 2 + l_out, 128)   # pooled1 polyphase scratch length
    return h2, w2, rs, l_out, l_pad, shp


# ---------------------------- fused Pallas kernel ----------------------------

def _fused_kernel(x1_ref, w1s_ref, b1_ref, mask_ref, w2s_ref, b2_ref,
                  ws_ref, bs_ref, wv_ref, bv_ref, sp_ref, vol_ref, p1_ref,
                  *, rs, l_out, l_pad):
    f32 = jnp.float32

    # ---- conv1 + ReLU + 2x2 max pool: one MXU matmul over 36 "super taps". ----
    # x1_ref: (36, 4*l_pad) = 4 output-parity chunks side by side (lane axis).
    out1 = jnp.dot(w1s_ref[...], x1_ref[...], preferred_element_type=f32)   # (64, 4*l_pad)
    m1 = jnp.maximum(jnp.maximum(out1[0:16], out1[16:32]),
                     jnp.maximum(out1[32:48], out1[48:64]))                 # pool over 4 sub-pos
    p1 = jnp.maximum(m1 + b1_ref[...], 0.0) * mask_ref[...]                 # bias+ReLU, zero garbage cols

    # Scatter the 4 output parities into the zero-initialised polyphase scratch:
    # exactly the layout conv2 consumes with purely static contiguous slices.
    p1_ref[...] = jnp.zeros_like(p1_ref)
    for c in range(4):
        p1_ref[16 * c:16 * (c + 1), rs + 1:rs + 1 + l_out] = (
            p1[:, c * l_pad:c * l_pad + l_out].astype(p1_ref.dtype))

    # ---- conv2 + ReLU + 2x2 max pool: one (128,576)@(576,L) MXU matmul. ----
    pieces = []
    for gy in range(3):
        for gx in range(3):
            ofs = gy * rs + gx
            pieces.append(p1_ref[:, ofs:ofs + l_out])          # (64, L) per offset group
    slab = jnp.concatenate(pieces, axis=0)                     # (576, L) bf16
    out2 = jnp.dot(w2s_ref[...], slab, preferred_element_type=f32)          # (128, L)
    m2 = jnp.maximum(jnp.maximum(out2[0:32], out2[32:64]),
                     jnp.maximum(out2[64:96], out2[96:128]))
    p2 = jnp.maximum(m2 + b2_ref[...], 0.0)                    # (32, L) f32

    # ---- fused heads: spatial Linear + ReLU + volume Linear (f32 accumulation). ----
    cols = []
    for k in range(3):
        t = jnp.sum(ws_ref[k].astype(f32) * p2, axis=1, keepdims=True)      # (32, 1)
        cols.append(jnp.sum(t, axis=0, keepdims=True))                      # (1, 1)
    spatial = jnp.concatenate(cols, axis=0) + bs_ref[...]                   # (3, 1)
    sp_ref[...] = spatial
    relu_sp = jnp.maximum(spatial, 0.0)
    vol_ref[...] = jnp.sum(relu_sp * wv_ref[...], axis=0, keepdims=True) + bv_ref[...]


# ---------------------------- XLA-side input prep ----------------------------

def _conv1_input_slab(dmap, rs, l_out, l_pad):
    """(N,1,H,W) -> (N, 36, 4*l_pad) bf16 conv1 "super-tap" slab.

    Row 6*i+j of parity chunk 2*r+s holds x_pad[2r+i + 4u, 2s+j + 4v] at flat
    position u*rs + v, so conv1+ReLU+pool1 for every output parity becomes a
    single (64,36)@(36,4*l_pad) matmul in the kernel (no strided VMEM access,
    no 25x im2col — cheap reindexing of the small raw input only)."""
    n, _, h, w = dmap.shape
    h2, w2 = h // 4, w // 4
    xp = jnp.pad(dmap[:, 0], ((0, 0), (2, 2), (2, 2)))         # (N, H+4, W+4)
    chunks = []
    for r in range(2):
        for s in range(2):
            rows = []
            for i in range(6):
                for j in range(6):
                    sl = xp[:, 2 * r + i::4, 2 * s + j::4][:, :h2, :w2]
                    sl = jnp.pad(sl, ((0, 0), (0, 0), (0, rs - w2)))
                    rows.append(sl.reshape(n, l_out))
            blk = jnp.stack(rows, axis=1)                      # (N, 36, L)
            chunks.append(jnp.pad(blk, ((0, 0), (0, 0), (0, l_pad - l_out))))
    return jnp.concatenate(chunks, axis=2).astype(jnp.bfloat16)


# ---------------------------- forward ----------------------------

def multi_head_convnet_forward(dmap, params):
    """dmap: (N, 1, H, W) float32 NCHW.  Returns (spatial (N, 3), volume (N,))."""
    n, c, h, w = dmap.shape
    assert c == 1
    h2, w2, rs, l_out, l_pad, shp = _geom(h, w)

    x1 = _conv1_input_slab(dmap, rs, l_out, l_pad)             # (N, 36, 4*l_pad) bf16

    # 0/1 mask zeroing the 2 garbage lane columns of every pooled row (compile-time const).
    m = np.zeros((h2, rs), np.float32)
    m[:, :w2] = 1.0
    mvec = np.zeros((l_pad,), np.float32)
    mvec[:l_out] = m.reshape(-1)
    mask4 = jnp.asarray(np.tile(mvec, 4)[None, :])             # (1, 4*l_pad)

    kernel = functools.partial(_fused_kernel, rs=rs, l_out=l_out, l_pad=l_pad)
    flops = n * (2 * 64 * 36 * 4 * l_pad + 2 * 128 * 576 * l_out + 8 * 32 * l_out)
    bytes_accessed = (x1.size * 2 + params["w1s"].size * 2 + params["w2s"].size * 2
                      + params["ws_k"].size * 2 + 16 * n)

    spatial, vol = pl.pallas_call(
        kernel,
        out_shape=(jax.ShapeDtypeStruct((n, 3, 1), jnp.float32),
                   jax.ShapeDtypeStruct((n, 1, 1), jnp.float32)),
        grid=(n,),
        in_specs=[
            pl.BlockSpec((None, 36, 4 * l_pad), lambda i: (i, 0, 0)),   # conv1 super-tap slab
            pl.BlockSpec((64, 36), lambda i: (0, 0)),                   # stacked conv1 weight
            pl.BlockSpec((16, 1), lambda i: (0, 0)),                    # b1
            pl.BlockSpec((1, 4 * l_pad), lambda i: (0, 0)),             # garbage-column mask
            pl.BlockSpec((128, 576), lambda i: (0, 0)),                 # stacked conv2 weight
            pl.BlockSpec((32, 1), lambda i: (0, 0)),                    # b2
            pl.BlockSpec((3, 32, l_out), lambda i: (0, 0, 0)),          # spatial head weight
            pl.BlockSpec((3, 1), lambda i: (0, 0)),                     # bs
            pl.BlockSpec((3, 1), lambda i: (0, 0)),                     # wv
            pl.BlockSpec((1, 1), lambda i: (0, 0)),                     # bv
        ],
        out_specs=(pl.BlockSpec((None, 3, 1), lambda i: (i, 0, 0)),
                   pl.BlockSpec((None, 1, 1), lambda i: (i, 0, 0))),
        scratch_shapes=[pltpu.VMEM((64, shp), jnp.bfloat16)],           # pooled1 polyphase map
        compiler_params=pltpu.CompilerParams(dimension_semantics=("parallel",)),
        cost_estimate=pl.CostEstimate(flops=flops, transcendentals=0,
                                      bytes_accessed=bytes_accessed),
    )(x1, params["w1s"], params["b1"], mask4, params["w2s"], params["b2"],
      params["ws_k"], params["bs"], params["wv"], params["bv"])

    # PyTorch: spatial_extents.squeeze(1) is a no-op on (N,3); volume.squeeze(1) -> (N,)
    return spatial[:, :, 0], vol[:, 0, 0]


# ---------------------------- parameters ----------------------------

def init_params(key, h, w):
    """PyTorch-default-style init; returns (torch-layout, kernel-layout) params."""
    h2, w2, rs, l_out, l_pad, shp = _geom(h, w)
    f = 32 * h2 * w2                     # == 60000 for the original 100x300 input
    ks = jax.random.split(key, 8)

    def u(k, shape, fan_in):
        bound = 1.0 / np.sqrt(fan_in)
        return jax.random.uniform(k, shape, jnp.float32, -bound, bound)

    tp = dict(
        w1=u(ks[0], (16, 1, 5, 5), 25),    b1=u(ks[1], (16,), 25),
        w2=u(ks[2], (32, 16, 5, 5), 400),  b2=u(ks[3], (32,), 400),
        ws=u(ks[4], (3, f), f),            bs=u(ks[5], (3,), f),
        wv=u(ks[6], (1, 3), 3),            bv=u(ks[7], (1,), 3),
    )

    w1 = np.asarray(tp["w1"])
    w2n = np.asarray(tp["w2"])

    # conv1: (pool sub-position x c_out, 36 super-taps); slot (i, j) = (a+dy, b+dx).
    w1s = np.zeros((64, 36), np.float32)
    for a in range(2):
        for b in range(2):
            r0 = 16 * (2 * a + b)
            for dy in range(5):
                for dx in range(5):
                    i, j = a + dy, b + dx
                    w1s[r0:r0 + 16, 6 * i + j] = w1[:, 0, dy, dx]

    # conv2: (sub-position x c_out, offset-group x parity x c_in) stacked weight.
    w2s = np.zeros((128, 576), np.float32)
    for a in range(2):
        for b in range(2):
            r0 = 32 * (2 * a + b)
            for gy in range(3):
                for gx in range(3):
                    for p in range(2):
                        for q in range(2):
                            dy, dx = 2 * gy + p - a, 2 * gx + q - b
                            if 0 <= dy < 5 and 0 <= dx < 5:
                                c0 = 64 * (3 * gy + gx) + 16 * (2 * p + q)
                                w2s[r0:r0 + 32, c0:c0 + 16] = w2n[:, :, dy, dx]

    # spatial head: lane-dense (3, 32, L) with exact zeros over the garbage columns.
    ws_k = np.zeros((3, 32, h2, rs), np.float32)
    ws_k[..., :w2] = np.asarray(tp["ws"]).reshape(3, 32, h2, w2)
    assert not ws_k[..., w2:].any()      # conv2 garbage columns must stay exactly zero
    ws_k = ws_k.reshape(3, 32, l_out)

    kp = dict(
        w1s=jnp.asarray(w1s, jnp.bfloat16),
        b1=tp["b1"].reshape(16, 1),
        w2s=jnp.asarray(w2s, jnp.bfloat16),
        b2=tp["b2"].reshape(32, 1),
        ws_k=jnp.asarray(ws_k, jnp.bfloat16),
        bs=tp["bs"].reshape(3, 1),
        wv=tp["wv"].reshape(3, 1),
        bv=tp["bv"].reshape(1, 1),
    )
    return tp, kp


# ---------------------------- pure-JAX reference (PyTorch semantics) ----------------------------

def reference_forward(dmap, tp):
    hi = jax.lax.Precision.HIGHEST
    y = jax.lax.conv_general_dilated(dmap, tp["w1"], (1, 1), ((2, 2), (2, 2)),
                                     dimension_numbers=("NCHW", "OIHW", "NCHW"),
                                     precision=hi)
    y = jnp.maximum(y + tp["b1"][None, :, None, None], 0.0)
    y = jax.lax.reduce_window(y, -jnp.inf, jax.lax.max,
                              (1, 1, 2, 2), (1, 1, 2, 2), "VALID")
    y = jax.lax.conv_general_dilated(y, tp["w2"], (1, 1), ((2, 2), (2, 2)),
                                     dimension_numbers=("NCHW", "OIHW", "NCHW"),
                                     precision=hi)
    y = jnp.maximum(y + tp["b2"][None, :, None, None], 0.0)
    y = jax.lax.reduce_window(y, -jnp.inf, jax.lax.max,
                              (1, 1, 2, 2), (1, 1, 2, 2), "VALID")
    flat = y.reshape(y.shape[0], -1)
    spatial = jnp.dot(flat, tp["ws"].T, precision=hi) + tp["bs"]
    vol = jnp.dot(jnp.maximum(spatial, 0.0), tp["wv"].T, precision=hi) + tp["bv"]
    return spatial, vol[:, 0]


# ---------------------------- demo ----------------------------

if __name__ == "__main__":
    N, H, W = 2, 16, 16   # small demo; head in-features = 32*(H//4)*(W//4) = 512
    key = jax.random.PRNGKey(0)
    p_key, x_key = jax.random.split(key)
    torch_params, kernel_params = init_params(p_key, H, W)
    dmap = jax.random.uniform(x_key, (N, 1, H, W), jnp.float32)

    fwd = jax.jit(multi_head_convnet_forward)
    spatial, volume = jax.block_until_ready(fwd(dmap, kernel_params))

    assert spatial.shape == (N, 3), spatial.shape
    assert volume.shape == (N,), volume.shape

    ref_sp, ref_vol = reference_forward(dmap, torch_params)
    np.testing.assert_allclose(np.asarray(spatial), np.asarray(ref_sp),
                               rtol=2e-2, atol=2e-2)
    np.testing.assert_allclose(np.asarray(volume), np.asarray(ref_vol),
                               rtol=2e-2, atol=2e-2)

    print("KERNEL_OK")
</pallas_src>

<mosaic_0001>
module attributes {stable_mosaic.version = 11 : i64} {
  func.func @_fused_kernel(%arg0: i32, %arg1: memref<1x36x512xbf16, #tpu.memory_space<vmem>>, %arg2: memref<64x36xbf16, #tpu.memory_space<vmem>>, %arg3: memref<16x1xf32, #tpu.memory_space<vmem>>, %arg4: memref<1x512xf32, #tpu.memory_space<vmem>>, %arg5: memref<128x576xbf16, #tpu.memory_space<vmem>>, %arg6: memref<32x1xf32, #tpu.memory_space<vmem>>, %arg7: memref<3x32x24xbf16, #tpu.memory_space<vmem>>, %arg8: memref<3x1xf32, #tpu.memory_space<vmem>>, %arg9: memref<3x1xf32, #tpu.memory_space<vmem>>, %arg10: memref<1x1xf32, #tpu.memory_space<vmem>>, %arg11: memref<1x3x1xf32, #tpu.memory_space<vmem>>, %arg12: memref<1x1x1xf32, #tpu.memory_space<vmem>>, %arg13: memref<64x128xbf16, #tpu.memory_space<vmem>>) attributes {dimension_semantics = [#tpu.dimension_semantics<parallel>], iteration_bounds = array<i64: 2>, scalar_prefetch = 0 : i64, scratch_operands = 1 : i64, tpu.core_type = #tpu.core_type<tc>, window_params = [{transform_indices = @transform_0, window_bounds = array<i64: 1, 36, 512>}, {pipeline_mode = #tpu.pipeline_mode<synchronous>, transform_indices = @transform_1, window_bounds = array<i64: 64, 36>}, {pipeline_mode = #tpu.pipeline_mode<synchronous>, transform_indices = @transform_2, window_bounds = array<i64: 16, 1>}, {pipeline_mode = #tpu.pipeline_mode<synchronous>, transform_indices = @transform_3, window_bounds = array<i64: 1, 512>}, {pipeline_mode = #tpu.pipeline_mode<synchronous>, transform_indices = @transform_4, window_bounds = array<i64: 128, 576>}, {pipeline_mode = #tpu.pipeline_mode<synchronous>, transform_indices = @transform_5, window_bounds = array<i64: 32, 1>}, {pipeline_mode = #tpu.pipeline_mode<synchronous>, transform_indices = @transform_6, window_bounds = array<i64: 3, 32, 24>}, {pipeline_mode = #tpu.pipeline_mode<synchronous>, transform_indices = @transform_7, window_bounds = array<i64: 3, 1>}, {pipeline_mode = #tpu.pipeline_mode<synchronous>, transform_indices = @transform_8, window_bounds = array<i64: 3, 1>}, {pipeline_mode = #tpu.pipeline_mode<synchronous>, transform_indices = @transform_9, window_bounds = array<i64: 1, 1>}, {transform_indices = @transform_10, window_bounds = array<i64: 1, 3, 1>}, {transform_indices = @transform_11, window_bounds = array<i64: 1, 1, 1>}]} {
    %c0 = arith.constant 0 : index
    %c0_0 = arith.constant 0 : index
    %0 = vector.load %arg2[%c0, %c0_0] : memref<64x36xbf16, #tpu.memory_space<vmem>>, vector<64x36xbf16>
    %c0_1 = arith.constant 0 : index
    %c0_2 = arith.constant 0 : index
    %c0_3 = arith.constant 0 : index
    %1 = vector.load %arg1[%c0_1, %c0_2, %c0_3] : memref<1x36x512xbf16, #tpu.memory_space<vmem>>, vector<1x36x512xbf16>
    %2 = vector.shape_cast %1 : vector<1x36x512xbf16> to vector<36x512xbf16>
    %cst = arith.constant dense<0.000000e+00> : vector<64x512xf32>
    %3 = tpu.matmul %0, %2, %cst {dimension_numbers = #tpu.dot_dimension_numbers<[1], [0], [0], [1], [0, 0, 1, 1], [], []>} : vector<64x36xbf16>, vector<36x512xbf16>, vector<64x512xf32> -> vector<64x512xf32>
    %4 = vector.extract_strided_slice %3 {offsets = [0, 0], sizes = [16, 512], strides = [1, 1]} : vector<64x512xf32> to vector<16x512xf32>
    %5 = vector.extract_strided_slice %3 {offsets = [16, 0], sizes = [16, 512], strides = [1, 1]} : vector<64x512xf32> to vector<16x512xf32>
    %6 = arith.maximumf %4, %5 : vector<16x512xf32>
    %7 = vector.extract_strided_slice %3 {offsets = [32, 0], sizes = [16, 512], strides = [1, 1]} : vector<64x512xf32> to vector<16x512xf32>
    %8 = vector.extract_strided_slice %3 {offsets = [48, 0], sizes = [16, 512], strides = [1, 1]} : vector<64x512xf32> to vector<16x512xf32>
    %9 = arith.maximumf %7, %8 : vector<16x512xf32>
    %10 = arith.maximumf %6, %9 : vector<16x512xf32>
    %c0_4 = arith.constant 0 : index
    %c0_5 = arith.constant 0 : index
    %11 = vector.load %arg3[%c0_4, %c0_5] : memref<16x1xf32, #tpu.memory_space<vmem>>, vector<16x1xf32>
    %12 = vector.broadcast %11 : vector<16x1xf32> to vector<16x512xf32>
    %13 = arith.addf %10, %12 : vector<16x512xf32>
    %cst_6 = arith.constant 0.000000e+00 : f32
    %14 = vector.broadcast %cst_6 : f32 to vector<16x512xf32>
    %15 = arith.maximumf %13, %14 : vector<16x512xf32>
    %c0_7 = arith.constant 0 : index
    %c0_8 = arith.constant 0 : index
    %16 = vector.load %arg4[%c0_7, %c0_8] : memref<1x512xf32, #tpu.memory_space<vmem>>, vector<1x512xf32>
    %17 = vector.broadcast %16 : vector<1x512xf32> to vector<16x512xf32>
    %18 = arith.mulf %15, %17 : vector<16x512xf32>
    %cst_9 = arith.constant 0.000000e+00 : bf16
    %19 = vector.broadcast %cst_9 : bf16 to vector<64x128xbf16>
    %c0_10 = arith.constant 0 : index
    %c0_11 = arith.constant 0 : index
    %20 = vector.load %arg13[%c0_10, %c0_11] : memref<64x128xbf16, #tpu.memory_space<vmem>>, vector<64x128xbf16>
    tpu.vector_store %arg13[%c0_10, %c0_11], %19 {strides = array<i32>} : memref<64x128xbf16, #tpu.memory_space<vmem>>, vector<64x128xbf16>,
    %21 = vector.extract_strided_slice %18 {offsets = [0, 0], sizes = [16, 24], strides = [1, 1]} : vector<16x512xf32> to vector<16x24xf32>
    %22 = arith.truncf %21 : vector<16x24xf32> to vector<16x24xbf16>
    %c0_12 = arith.constant 0 : index
    %c7 = arith.constant 7 : index
    %23 = vector.load %arg13[%c0_12, %c7] : memref<64x128xbf16, #tpu.memory_space<vmem>>, vector<16x24xbf16>
    tpu.vector_store %arg13[%c0_12, %c7], %22 {strides = array<i32>} : memref<64x128xbf16, #tpu.memory_space<vmem>>, vector<16x24xbf16>,
    %24 = vector.extract_strided_slice %18 {offsets = [0, 128], sizes = [16, 24], strides = [1, 1]} : vector<16x512xf32> to vector<16x24xf32>
    %25 = arith.truncf %24 : vector<16x24xf32> to vector<16x24xbf16>
    %c16 = arith.constant 16 : index
    %c7_13 = arith.constant 7 : index
    %26 = vector.load %arg13[%c16, %c7_13] : memref<64x128xbf16, #tpu.memory_space<vmem>>, vector<16x24xbf16>
    tpu.vector_store %arg13[%c16, %c7_13], %25 {strides = array<i32>} : memref<64x128xbf16, #tpu.memory_space<vmem>>, vector<16x24xbf16>,
    %27 = vector.extract_strided_slice %18 {offsets = [0, 256], sizes = [16, 24], strides = [1, 1]} : vector<16x512xf32> to vector<16x24xf32>
    %28 = arith.truncf %27 : vector<16x24xf32> to vector<16x24xbf16>
    %c32 = arith.constant 32 : index
    %c7_14 = arith.constant 7 : index
    %29 = vector.load %arg13[%c32, %c7_14] : memref<64x128xbf16, #tpu.memory_space<vmem>>, vector<16x24xbf16>
    tpu.vector_store %arg13[%c32, %c7_14], %28 {strides = array<i32>} : memref<64x128xbf16, #tpu.memory_space<vmem>>, vector<16x24xbf16>,
    %30 = vector.extract_strided_slice %18 {offsets = [0, 384], sizes = [16, 24], strides = [1, 1]} : vector<16x512xf32> to vector<16x24xf32>
    %31 = arith.truncf %30 : vector<16x24xf32> to vector<16x24xbf16>
    %c48 = arith.constant 48 : index
    %c7_15 = arith.constant 7 : index
    %32 = vector.load %arg13[%c48, %c7_15] : memref<64x128xbf16, #tpu.memory_space<vmem>>, vector<16x24xbf16>
    tpu.vector_store %arg13[%c48, %c7_15], %31 {strides = array<i32>} : memref<64x128xbf16, #tpu.memory_space<vmem>>, vector<16x24xbf16>,
    %c0_16 = arith.constant 0 : index
    %c0_17 = arith.constant 0 : index
    %33 = vector.load %arg13[%c0_16, %c0_17] : memref<64x128xbf16, #tpu.memory_space<vmem>>, vector<64x24xbf16>
    %c0_18 = arith.constant 0 : index
    %c1 = arith.constant 1 : index
    %34 = vector.load %arg13[%c0_18, %c1] : memref<64x128xbf16, #tpu.memory_space<vmem>>, vector<64x24xbf16>
    %c0_19 = arith.constant 0 : index
    %c2 = arith.constant 2 : index
    %35 = vector.load %arg13[%c0_19, %c2] : memref<64x128xbf16, #tpu.memory_space<vmem>>, vector<64x24xbf16>
    %c0_20 = arith.constant 0 : index
    %c6 = arith.constant 6 : index
    %36 = vector.load %arg13[%c0_20, %c6] : memref<64x128xbf16, #tpu.memory_space<vmem>>, vector<64x24xbf16>
    %c0_21 = arith.constant 0 : index
    %c7_22 = arith.constant 7 : index
    %37 = vector.load %arg13[%c0_21, %c7_22] : memref<64x128xbf16, #tpu.memory_space<vmem>>, vector<64x24xbf16>
    %c0_23 = arith.constant 0 : index
    %c8 = arith.constant 8 : index
    %38 = vector.load %arg13[%c0_23, %c8] : memref<64x128xbf16, #tpu.memory_space<vmem>>, vector<64x24xbf16>
    %c0_24 = arith.constant 0 : index
    %c12 = arith.constant 12 : index
    %39 = vector.load %arg13[%c0_24, %c12] : memref<64x128xbf16, #tpu.memory_space<vmem>>, vector<64x24xbf16>
    %c0_25 = arith.constant 0 : index
    %c13 = arith.constant 13 : index
    %40 = vector.load %arg13[%c0_25, %c13] : memref<64x128xbf16, #tpu.memory_space<vmem>>, vector<64x24xbf16>
    %c0_26 = arith.constant 0 : index
    %c14 = arith.constant 14 : index
    %41 = vector.load %arg13[%c0_26, %c14] : memref<64x128xbf16, #tpu.memory_space<vmem>>, vector<64x24xbf16>
    %42 = tpu.concatenate %33, %34, %35, %36, %37, %38, %39, %40, %41 in 0 : vector<64x24xbf16>, vector<64x24xbf16>, vector<64x24xbf16>, vector<64x24xbf16>, vector<64x24xbf16>, vector<64x24xbf16>, vector<64x24xbf16>, vector<64x24xbf16>, vector<64x24xbf16> -> vector<576x24xbf16>
    %c0_27 = arith.constant 0 : index
    %c0_28 = arith.constant 0 : index
    %43 = vector.load %arg5[%c0_27, %c0_28] : memref<128x576xbf16, #tpu.memory_space<vmem>>, vector<128x576xbf16>
    %cst_29 = arith.constant dense<0.000000e+00> : vector<128x24xf32>
    %44 = tpu.matmul %43, %42, %cst_29 {dimension_numbers = #tpu.dot_dimension_numbers<[1], [0], [0], [1], [0, 0, 1, 1], [], []>} : vector<128x576xbf16>, vector<576x24xbf16>, vector<128x24xf32> -> vector<128x24xf32>
    %45 = vector.extract_strided_slice %44 {offsets = [0, 0], sizes = [32, 24], strides = [1, 1]} : vector<128x24xf32> to vector<32x24xf32>
    %46 = vector.extract_strided_slice %44 {offsets = [32, 0], sizes = [32, 24], strides = [1, 1]} : vector<128x24xf32> to vector<32x24xf32>
    %47 = arith.maximumf %45, %46 : vector<32x24xf32>
    %48 = vector.extract_strided_slice %44 {offsets = [64, 0], sizes = [32, 24], strides = [1, 1]} : vector<128x24xf32> to vector<32x24xf32>
    %49 = vector.extract_strided_slice %44 {offsets = [96, 0], sizes = [32, 24], strides = [1, 1]} : vector<128x24xf32> to vector<32x24xf32>
    %50 = arith.maximumf %48, %49 : vector<32x24xf32>
    %51 = arith.maximumf %47, %50 : vector<32x24xf32>
    %c0_30 = arith.constant 0 : index
    %c0_31 = arith.constant 0 : index
    %52 = vector.load %arg6[%c0_30, %c0_31] : memref<32x1xf32, #tpu.memory_space<vmem>>, vector<32x1xf32>
    %53 = vector.broadcast %52 : vector<32x1xf32> to vector<32x24xf32>
    %54 = arith.addf %51, %53 : vector<32x24xf32>
    %cst_32 = arith.constant 0.000000e+00 : f32
    %55 = vector.broadcast %cst_32 : f32 to vector<32x24xf32>
    %56 = arith.maximumf %54, %55 : vector<32x24xf32>
    %c0_33 = arith.constant 0 : index
    %c0_34 = arith.constant 0 : index
    %c0_35 = arith.constant 0 : index
    %57 = vector.load %arg7[%c0_33, %c0_34, %c0_35] : memref<3x32x24xbf16, #tpu.memory_space<vmem>>, vector<1x32x24xbf16>
    %58 = vector.shape_cast %57 : vector<1x32x24xbf16> to vector<32x24xbf16>
    %59 = arith.extf %58 : vector<32x24xbf16> to vector<32x24xf32>
    %60 = arith.mulf %59, %56 : vector<32x24xf32>
    %cst_36 = arith.constant dense<0.000000e+00> : vector<32xf32>
    %61 = vector.multi_reduction <add>, %60, %cst_36 [1] : vector<32x24xf32> to vector<32xf32>
    %62 = vector.shape_cast %61 : vector<32xf32> to vector<32x1xf32>
    %cst_37 = arith.constant dense<0.000000e+00> : vector<1xf32>
    %63 = vector.multi_reduction <add>, %62, %cst_37 [0] : vector<32x1xf32> to vector<1xf32>
    %64 = vector.shape_cast %63 : vector<1xf32> to vector<1x1xf32>
    %c1_38 = arith.constant 1 : index
    %c0_39 = arith.constant 0 : index
    %c0_40 = arith.constant 0 : index
    %65 = vector.load %arg7[%c1_38, %c0_39, %c0_40] : memref<3x32x24xbf16, #tpu.memory_space<vmem>>, vector<1x32x24xbf16>
    %66 = vector.shape_cast %65 : vector<1x32x24xbf16> to vector<32x24xbf16>
    %67 = arith.extf %66 : vector<32x24xbf16> to vector<32x24xf32>
    %68 = arith.mulf %67, %56 : vector<32x24xf32>
    %cst_41 = arith.constant dense<0.000000e+00> : vector<32xf32>
    %69 = vector.multi_reduction <add>, %68, %cst_41 [1] : vector<32x24xf32> to vector<32xf32>
    %70 = vector.shape_cast %69 : vector<32xf32> to vector<32x1xf32>
    %cst_42 = arith.constant dense<0.000000e+00> : vector<1xf32>
    %71 = vector.multi_reduction <add>, %70, %cst_42 [0] : vector<32x1xf32> to vector<1xf32>
    %72 = vector.shape_cast %71 : vector<1xf32> to vector<1x1xf32>
    %c2_43 = arith.constant 2 : index
    %c0_44 = arith.constant 0 : index
    %c0_45 = arith.constant 0 : index
    %73 = vector.load %arg7[%c2_43, %c0_44, %c0_45] : memref<3x32x24xbf16, #tpu.memory_space<vmem>>, vector<1x32x24xbf16>
    %74 = vector.shape_cast %73 : vector<1x32x24xbf16> to vector<32x24xbf16>
    %75 = arith.extf %74 : vector<32x24xbf16> to vector<32x24xf32>
    %76 = arith.mulf %75, %56 : vector<32x24xf32>
    %cst_46 = arith.constant dense<0.000000e+00> : vector<32xf32>
    %77 = vector.multi_reduction <add>, %76, %cst_46 [1] : vector<32x24xf32> to vector<32xf32>
    %78 = vector.shape_cast %77 : vector<32xf32> to vector<32x1xf32>
    %cst_47 = arith.constant dense<0.000000e+00> : vector<1xf32>
    %79 = vector.multi_reduction <add>, %78, %cst_47 [0] : vector<32x1xf32> to vector<1xf32>
    %80 = vector.shape_cast %79 : vector<1xf32> to vector<1x1xf32>
    %81 = tpu.concatenate %64, %72, %80 in 0 : vector<1x1xf32>, vector<1x1xf32>, vector<1x1xf32> -> vector<3x1xf32>
    %c0_48 = arith.constant 0 : index
    %c0_49 = arith.constant 0 : index
    %82 = vector.load %arg8[%c0_48, %c0_49] : memref<3x1xf32, #tpu.memory_space<vmem>>, vector<3x1xf32>
    %83 = arith.addf %81, %82 : vector<3x1xf32>
    %c0_50 = arith.constant 0 : index
    %c0_51 = arith.constant 0 : index
    %c0_52 = arith.constant 0 : index
    %84 = vector.load %arg11[%c0_50, %c0_51, %c0_52] : memref<1x3x1xf32, #tpu.memory_space<vmem>>, vector<1x3x1xf32>
    %85 = vector.shape_cast %84 : vector<1x3x1xf32> to vector<3x1xf32>
    %86 = vector.shape_cast %83 : vector<3x1xf32> to vector<1x3x1xf32>
    tpu.vector_store %arg11[%c0_50, %c0_51, %c0_52], %86 {strides = array<i32>} : memref<1x3x1xf32, #tpu.memory_space<vmem>>, vector<1x3x1xf32>,
    %cst_53 = arith.constant 0.000000e+00 : f32
    %87 = vector.broadcast %cst_53 : f32 to vector<3x1xf32>
    %88 = arith.maximumf %83, %87 : vector<3x1xf32>
    %c0_54 = arith.constant 0 : index
    %c0_55 = arith.constant 0 : index
    %89 = vector.load %arg9[%c0_54, %c0_55] : memref<3x1xf32, #tpu.memory_space<vmem>>, vector<3x1xf32>
    %90 = arith.mulf %88, %89 : vector<3x1xf32>
    %cst_56 = arith.constant dense<0.000000e+00> : vector<1xf32>
    %91 = vector.multi_reduction <add>, %90, %cst_56 [0] : vector<3x1xf32> to vector<1xf32>
    %92 = vector.shape_cast %91 : vector<1xf32> to vector<1x1xf32>
    %c0_57 = arith.constant 0 : index
    %c0_58 = arith.constant 0 : index
    %93 = vector.load %arg10[%c0_57, %c0_58] : memref<1x1xf32, #tpu.memory_space<vmem>>, vector<1x1xf32>
    %94 = arith.addf %92, %93 : vector<1x1xf32>
    %c0_59 = arith.constant 0 : index
    %c0_60 = arith.constant 0 : index
    %c0_61 = arith.constant 0 : index
    %95 = vector.load %arg12[%c0_59, %c0_60, %c0_61] : memref<1x1x1xf32, #tpu.memory_space<vmem>>, vector<1x1x1xf32>
    %96 = vector.shape_cast %95 : vector<1x1x1xf32> to vector<1x1xf32>
    %97 = vector.shape_cast %94 : vector<1x1xf32> to vector<1x1x1xf32>
    tpu.vector_store %arg12[%c0_59, %c0_60, %c0_61], %97 {strides = array<i32>} : memref<1x1x1xf32, #tpu.memory_space<vmem>>, vector<1x1x1xf32>,
    return
  }
  func.func @transform_0(%arg0: i32) -> (i32, i32, i32) {
    %c0_i32 = arith.constant 0 : i32
    %c0_i32_0 = arith.constant 0 : i32
    %c0_i32_1 = arith.constant 0 : i32
    return %arg0, %c0_i32, %c0_i32_0 : i32, i32, i32
  }
  func.func @transform_1(%arg0: i32) -> (i32, i32) {
    %c0_i32 = arith.constant 0 : i32
    %c0_i32_0 = arith.constant 0 : i32
    %c0_i32_1 = arith.constant 0 : i32
    return %c0_i32, %c0_i32_0 : i32, i32
  }
  func.func @transform_2(%arg0: i32) -> (i32, i32) {
    %c0_i32 = arith.constant 0 : i32
    %c0_i32_0 = arith.constant 0 : i32
    %c0_i32_1 = arith.constant 0 : i32
    return %c0_i32, %c0_i32_0 : i32, i32
  }
  func.func @transform_3(%arg0: i32) -> (i32, i32) {
    %c0_i32 = arith.constant 0 : i32
    %c0_i32_0 = arith.constant 0 : i32
    %c0_i32_1 = arith.constant 0 : i32
    return %c0_i32, %c0_i32_0 : i32, i32
  }
  func.func @transform_4(%arg0: i32) -> (i32, i32) {
    %c0_i32 = arith.constant 0 : i32
    %c0_i32_0 = arith.constant 0 : i32
    %c0_i32_1 = arith.constant 0 : i32
    return %c0_i32, %c0_i32_0 : i32, i32
  }
  func.func @transform_5(%arg0: i32) -> (i32, i32) {
    %c0_i32 = arith.constant 0 : i32
    %c0_i32_0 = arith.constant 0 : i32
    %c0_i32_1 = arith.constant 0 : i32
    return %c0_i32, %c0_i32_0 : i32, i32
  }
  func.func @transform_6(%arg0: i32) -> (i32, i32, i32) {
    %c0_i32 = arith.constant 0 : i32
    %c0_i32_0 = arith.constant 0 : i32
    %c0_i32_1 = arith.constant 0 : i32
    %c0_i32_2 = arith.constant 0 : i32
    return %c0_i32, %c0_i32_0, %c0_i32_1 : i32, i32, i32
  }
  func.func @transform_7(%arg0: i32) -> (i32, i32) {
    %c0_i32 = arith.constant 0 : i32
    %c0_i32_0 = arith.constant 0 : i32
    %c0_i32_1 = arith.constant 0 : i32
    return %c0_i32, %c0_i32_0 : i32, i32
  }
  func.func @transform_8(%arg0: i32) -> (i32, i32) {
    %c0_i32 = arith.constant 0 : i32
    %c0_i32_0 = arith.constant 0 : i32
    %c0_i32_1 = arith.constant 0 : i32
    return %c0_i32, %c0_i32_0 : i32, i32
  }
  func.func @transform_9(%arg0: i32) -> (i32, i32) {
    %c0_i32 = arith.constant 0 : i32
    %c0_i32_0 = arith.constant 0 : i32
    %c0_i32_1 = arith.constant 0 : i32
    return %c0_i32, %c0_i32_0 : i32, i32
  }
  func.func @transform_10(%arg0: i32) -> (i32, i32, i32) {
    %c0_i32 = arith.constant 0 : i32
    %c0_i32_0 = arith.constant 0 : i32
    %c0_i32_1 = arith.constant 0 : i32
    return %arg0, %c0_i32, %c0_i32_0 : i32, i32, i32
  }
  func.func @transform_11(%arg0: i32) -> (i32, i32, i32) {
    %c0_i32 = arith.constant 0 : i32
    %c0_i32_0 = arith.constant 0 : i32
    %c0_i32_1 = arith.constant 0 : i32
    return %arg0, %c0_i32, %c0_i32_0 : i32, i32, i32
  }
}

</mosaic_0001>

<llo_original>
// kernel: multi_head_convnet_forward.1
$region0: #{multi_head_convnet_forward.1}
  #allocation0 [shape = 'u32[]', space=smem, size = 0x4, offset = 0x4, fixed_abs, tag = 'smem constant byte address 0x4 - core index']
  #allocation1 [shape = 'u32[144,128]{1,0:T(1,128)}', space=vmem, size = 0x12000, scoped, tag = 'internal scratch']
  #allocation2 [shape = 'bf16[64,128]{1,0:T(16,128)(2,1)}', space=vmem, size = 0x4000, scoped, tag = 'scratch operand']
  #allocation3 [shape = 'f32[1,1]{1,0:T(1,128)S(1)}', space=vmem, size = 0x200, scoped, tag = 'scoped memory for multi_head_convnet_forward.1']
  %s0 = inlined_call_operand.vmem [shape: bf16[2,36,512], index: 0, kind: input, shape index: {}]
  %s1 = inlined_call_operand.vmem [shape: bf16[64,36], index: 1, kind: input, shape index: {}]
  %s2 = inlined_call_operand.vmem [shape: f32[16,1], index: 2, kind: input, shape index: {}]
  %s3 = inlined_call_operand.vmem [shape: f32[1,512], index: 3, kind: input, shape index: {}]
  %s4 = inlined_call_operand.vmem [shape: bf16[128,576], index: 4, kind: input, shape index: {}]
  %s5 = inlined_call_operand.vmem [shape: f32[32,1], index: 5, kind: input, shape index: {}]
  %s6 = inlined_call_operand.vmem [shape: bf16[3,32,24], index: 6, kind: input, shape index: {}]
  %s7 = inlined_call_operand.vmem [shape: f32[3,1], index: 7, kind: input, shape index: {}]
  %s8 = inlined_call_operand.vmem [shape: f32[3,1], index: 8, kind: input, shape index: {}]
  %s9 = inlined_call_operand.<no memory space> [shape: f32[1,1], index: 9, kind: input, shape index: {}]
  %s10 = inlined_call_operand.vmem [shape: f32[2,3,1], index: 10, kind: output, shape index: {0}]
  %s11 = inlined_call_operand.vmem [shape: f32[2,1,1], index: 11, kind: output, shape index: {1}]
  %12 = xla_tuple %s10, %s11
  %s13 = sld [smem:[#allocation0]]
  $region81: #{multi_head_convnet_forward.1} parent=0
    _
  %s15 = ssub.s32 1, %s13
  %s16 = scalar_select 0, %s15, %s13
  %v17 = vstv %s9
  %18 = vst [vmem:[#allocation3] sm:$0x1] %v17
  loop: start=0, step=1, limit=4
  $region2: #{multi_head_convnet_forward.1} parent=0 // loop_pre_header
    _
  $region3: #{multi_head_convnet_forward.1} parent=0 // loop_header
    %s20 = sphi 0, %s24
    %p21 = scmp.ge.s32.totalorder %s20, 4
    %s30 = sphi 0, %s32
    %s33 = sphi 0, %s30
    %s34 = sphi 0, %s33
    %s50 = sphi 0, %s34
    %s54 = sphi 0, %s54
    %s56 = sphi 0, %s54
    %s57 = sphi 0, %s56
    %s71 = sphi 0, %s57
    %s75 = sphi 0, %s75
    %s77 = sphi 0, %s75
    %s78 = sphi 0, %s77
    %s92 = sphi 0, %s78
    %s96 = sphi 0, %s96
    %s98 = sphi 0, %s96
    %s99 = sphi 0, %s98
    %s113 = sphi 0, %s99
    %s117 = sphi 0, %s117
    %s119 = sphi 0, %s117
    %s120 = sphi 0, %s119
    %s134 = sphi 0, %s120
    %s138 = sphi 0, %s138
    %s140 = sphi 0, %s138
    %s141 = sphi 0, %s140
    %s155 = sphi 0, %s141
    %s159 = sphi 0, %s159
    %s161 = sphi 0, %s159
    %s162 = sphi 0, %s161
    %s176 = sphi 0, %s162
    %s180 = sphi 0, %s180
    %s182 = sphi 0, %s180
    %s183 = sphi 0, %s182
    %s197 = sphi 0, %s183
    %s201 = sphi 0, %s201
    %s203 = sphi 0, %s201
    %s204 = sphi 0, %s203
    %s218 = sphi 0, %s204
    %s222 = sphi 0, %s222
    %s224 = sphi 0, %s222
    %s225 = sphi 0, %s224
    %s239 = sphi 0, %s225
    %s245 = sphi 0, %s247
    %s248 = sphi 0, %s245
    %s249 = sphi 0, %s248
    %s265 = sphi 0, %s249
    %s271 = sphi 0, %s273
    %s274 = sphi 0, %s271
    %s275 = sphi 0, %s274
    %s291 = sphi 0, %s275
  $region4: #{multi_head_convnet_forward.1} parent=0 // loop_header_branch
    %23 = sbr.rel (%p21) target = $region8
  $region5: #{multi_head_convnet_forward.1} parent=0 // loop_body
    %s25 = ssub.s32 %s20, 1
    %s26 = ssub.s32 %s20, 2
    %s27 = sadd.s32 %s20, 1
    %s28 = ssub.s32 %s20, %s27
    %p29 = scmp.eq.s32.totalorder %s28, 0
    %s31 = sadd.s32 %s30, 1
    %s32 = scalar_select %p29, %s30, %s31
    %p35 = pneg %p29
    %p36 = scmp.eq.s32.totalorder %s20, 1
    %p37 = por %p35, %p36
    %p38 = scmp.ne.s32.totalorder %s30, %s33
    %p39 = scmp.eq.s32.totalorder %s20, 0
    %p40 = por %p38, %p39
    %p41 = scmp.ne.s32.totalorder %s30, %s33
    %p42 = scmp.eq.s32.totalorder %s25, 1
    %p43 = por %p41, %p42
    %p44 = scmp.ne.s32.totalorder %s33, %s34
    %p45 = scmp.eq.s32.totalorder %s25, 0
    %p46 = por %p44, %p45
    %p47 = scmp.ne.s32.totalorder %s33, %s34
    %p48 = scmp.eq.s32.totalorder %s26, 1
    %p49 = por %p47, %p48
    %p51 = scmp.ne.s32.totalorder %s34, %s50
    %p52 = scmp.eq.s32.totalorder %s26, 0
    %p53 = por %p51, %p52
    %s55 = sadd.s32 %s54, 1
    %p58 = scmp.eq.s32.totalorder %s20, 1
    %p59 = scmp.ne.s32.totalorder %s54, %s56
    %p60 = scmp.eq.s32.totalorder %s20, 0
    %p61 = por %p59, %p60
    %p62 = scmp.ne.s32.totalorder %s54, %s56
    %p63 = scmp.eq.s32.totalorder %s25, 1
    %p64 = por %p62, %p63
    %p65 = scmp.ne.s32.totalorder %s56, %s57
    %p66 = scmp.eq.s32.totalorder %s25, 0
    %p67 = por %p65, %p66
    %p68 = scmp.ne.s32.totalorder %s56, %s57
    %p69 = scmp.eq.s32.totalorder %s26, 1
    %p70 = por %p68, %p69
    %p72 = scmp.ne.s32.totalorder %s57, %s71
    %p73 = scmp.eq.s32.totalorder %s26, 0
    %p74 = por %p72, %p73
    %s76 = sadd.s32 %s75, 1
    %p79 = scmp.eq.s32.totalorder %s20, 1
    %p80 = scmp.ne.s32.totalorder %s75, %s77
    %p81 = scmp.eq.s32.totalorder %s20, 0
    %p82 = por %p80, %p81
    %p83 = scmp.ne.s32.totalorder %s75, %s77
    %p84 = scmp.eq.s32.totalorder %s25, 1
    %p85 = por %p83, %p84
    %p86 = scmp.ne.s32.totalorder %s77, %s78
    %p87 = scmp.eq.s32.totalorder %s25, 0
    %p88 = por %p86, %p87
    %p89 = scmp.ne.s32.totalorder %s77, %s78
    %p90 = scmp.eq.s32.totalorder %s26, 1
    %p91 = por %p89, %p90
    %p93 = scmp.ne.s32.totalorder %s78, %s92
    %p94 = scmp.eq.s32.totalorder %s26, 0
    %p95 = por %p93, %p94
    %s97 = sadd.s32 %s96, 1
    %p100 = scmp.eq.s32.totalorder %s20, 1
    %p101 = scmp.ne.s32.totalorder %s96, %s98
    %p102 = scmp.eq.s32.totalorder %s20, 0
    %p103 = por %p101, %p102
    %p104 = scmp.ne.s32.totalorder %s96, %s98
    %p105 = scmp.eq.s32.totalorder %s25, 1
    %p106 = por %p104, %p105
    %p107 = scmp.ne.s32.totalorder %s98, %s99
    %p108 = scmp.eq.s32.totalorder %s25, 0
    %p109 = por %p107, %p108
    %p110 = scmp.ne.s32.totalorder %s98, %s99
    %p111 = scmp.eq.s32.totalorder %s26, 1
    %p112 = por %p110, %p111
    %p114 = scmp.ne.s32.totalorder %s99, %s113
    %p115 = scmp.eq.s32.totalorder %s26, 0
    %p116 = por %p114, %p115
    %s118 = sadd.s32 %s117, 1
    %p121 = scmp.eq.s32.totalorder %s20, 1
    %p122 = scmp.ne.s32.totalorder %s117, %s119
    %p123 = scmp.eq.s32.totalorder %s20, 0
    %p124 = por %p122, %p123
    %p125 = scmp.ne.s32.totalorder %s117, %s119
    %p126 = scmp.eq.s32.totalorder %s25, 1
    %p127 = por %p125, %p126
    %p128 = scmp.ne.s32.totalorder %s119, %s120
    %p129 = scmp.eq.s32.totalorder %s25, 0
    %p130 = por %p128, %p129
    %p131 = scmp.ne.s32.totalorder %s119, %s120
    %p132 = scmp.eq.s32.totalorder %s26, 1
    %p133 = por %p131, %p132
    %p135 = scmp.ne.s32.totalorder %s120, %s134
    %p136 = scmp.eq.s32.totalorder %s26, 0
    %p137 = por %p135, %p136
    %s139 = sadd.s32 %s138, 1
    %p142 = scmp.eq.s32.totalorder %s20, 1
    %p143 = scmp.ne.s32.totalorder %s138, %s140
    %p144 = scmp.eq.s32.totalorder %s20, 0
    %p145 = por %p143, %p144
    %p146 = scmp.ne.s32.totalorder %s138, %s140
    %p147 = scmp.eq.s32.totalorder %s25, 1
    %p148 = por %p146, %p147
    %p149 = scmp.ne.s32.totalorder %s140, %s141
    %p150 = scmp.eq.s32.totalorder %s25, 0
    %p151 = por %p149, %p150
    %p152 = scmp.ne.s32.totalorder %s140, %s141
    %p153 = scmp.eq.s32.totalorder %s26, 1
    %p154 = por %p152, %p153
    %p156 = scmp.ne.s32.totalorder %s141, %s155
    %p157 = scmp.eq.s32.totalorder %s26, 0
    %p158 = por %p156, %p157
    %s160 = sadd.s32 %s159, 1
    %p163 = scmp.eq.s32.totalorder %s20, 1
    %p164 = scmp.ne.s32.totalorder %s159, %s161
    %p165 = scmp.eq.s32.totalorder %s20, 0
    %p166 = por %p164, %p165
    %p167 = scmp.ne.s32.totalorder %s159, %s161
    %p168 = scmp.eq.s32.totalorder %s25, 1
    %p169 = por %p167, %p168
    %p170 = scmp.ne.s32.totalorder %s161, %s162
    %p171 = scmp.eq.s32.totalorder %s25, 0
    %p172 = por %p170, %p171
    %p173 = scmp.ne.s32.totalorder %s161, %s162
    %p174 = scmp.eq.s32.totalorder %s26, 1
    %p175 = por %p173, %p174
    %p177 = scmp.ne.s32.totalorder %s162, %s176
    %p178 = scmp.eq.s32.totalorder %s26, 0
    %p179 = por %p177, %p178
    %s181 = sadd.s32 %s180, 1
    %p184 = scmp.eq.s32.totalorder %s20, 1
    %p185 = scmp.ne.s32.totalorder %s180, %s182
    %p186 = scmp.eq.s32.totalorder %s20, 0
    %p187 = por %p185, %p186
    %p188 = scmp.ne.s32.totalorder %s180, %s182
    %p189 = scmp.eq.s32.totalorder %s25, 1
    %p190 = por %p188, %p189
    %p191 = scmp.ne.s32.totalorder %s182, %s183
    %p192 = scmp.eq.s32.totalorder %s25, 0
    %p193 = por %p191, %p192
    %p194 = scmp.ne.s32.totalorder %s182, %s183
    %p195 = scmp.eq.s32.totalorder %s26, 1
    %p196 = por %p194, %p195
    %p198 = scmp.ne.s32.totalorder %s183, %s197
    %p199 = scmp.eq.s32.totalorder %s26, 0
    %p200 = por %p198, %p199
    %s202 = sadd.s32 %s201, 1
    %p205 = scmp.eq.s32.totalorder %s20, 1
    %p206 = scmp.ne.s32.totalorder %s201, %s203
    %p207 = scmp.eq.s32.totalorder %s20, 0
    %p208 = por %p206, %p207
    %p209 = scmp.ne.s32.totalorder %s201, %s203
    %p210 = scmp.eq.s32.totalorder %s25, 1
    %p211 = por %p209, %p210
    %p212 = scmp.ne.s32.totalorder %s203, %s204
    %p213 = scmp.eq.s32.totalorder %s25, 0
    %p214 = por %p212, %p213
    %p215 = scmp.ne.s32.totalorder %s203, %s204
    %p216 = scmp.eq.s32.totalorder %s26, 1
    %p217 = por %p215, %p216
    %p219 = scmp.ne.s32.totalorder %s204, %s218
    %p220 = scmp.eq.s32.totalorder %s26, 0
    %p221 = por %p219, %p220
    %s223 = sadd.s32 %s222, 1
    %p226 = scmp.eq.s32.totalorder %s20, 1
    %p227 = scmp.ne.s32.totalorder %s222, %s224
    %p228 = scmp.eq.s32.totalorder %s20, 0
    %p229 = por %p227, %p228
    %p230 = scmp.ne.s32.totalorder %s222, %s224
    %p231 = scmp.eq.s32.totalorder %s25, 1
    %p232 = por %p230, %p231
    %p233 = scmp.ne.s32.totalorder %s224, %s225
    %p234 = scmp.eq.s32.totalorder %s25, 0
    %p235 = por %p233, %p234
    %p236 = scmp.ne.s32.totalorder %s224, %s225
    %p237 = scmp.eq.s32.totalorder %s26, 1
    %p238 = por %p236, %p237
    %p240 = scmp.ne.s32.totalorder %s225, %s239
    %p241 = scmp.eq.s32.totalorder %s26, 0
    %p242 = por %p240, %p241
    %s243 = ssub.s32 %s20, %s27
    %p244 = scmp.eq.s32.totalorder %s243, 0
    %s246 = sadd.s32 %s245, 1
    %s247 = scalar_select %p244, %s245, %s246
    %p250 = pneg %p244
    %p251 = scmp.eq.s32.totalorder %s20, 1
    %p252 = por %p250, %p251
    %p253 = scmp.ne.s32.totalorder %s245, %s248
    %p254 = scmp.eq.s32.totalorder %s20, 0
    %p255 = por %p253, %p254
    %p256 = scmp.ne.s32.totalorder %s245, %s248
    %p257 = scmp.eq.s32.totalorder %s25, 1
    %p258 = por %p256, %p257
    %p259 = scmp.ne.s32.totalorder %s248, %s249
    %p260 = scmp.eq.s32.totalorder %s25, 0
    %p261 = por %p259, %p260
    %p262 = scmp.ne.s32.totalorder %s248, %s249
    %p263 = scmp.eq.s32.totalorder %s26, 1
    %p264 = por %p262, %p263
    %p266 = scmp.ne.s32.totalorder %s249, %s265
    %p267 = scmp.eq.s32.totalorder %s26, 0
    %p268 = por %p266, %p267
    %s269 = ssub.s32 %s20, %s27
    %p270 = scmp.eq.s32.totalorder %s269, 0
    %s272 = sadd.s32 %s271, 1
    %s273 = scalar_select %p270, %s271, %s272
    %p276 = pneg %p270
    %p277 = scmp.eq.s32.totalorder %s20, 1
    %p278 = por %p276, %p277
    %p279 = scmp.ne.s32.totalorder %s271, %s274
    %p280 = scmp.eq.s32.totalorder %s20, 0
    %p281 = por %p279, %p280
    %p282 = scmp.ne.s32.totalorder %s271, %s274
    %p283 = scmp.eq.s32.totalorder %s25, 1
    %p284 = por %p282, %p283
    %p285 = scmp.ne.s32.totalorder %s274, %s275
    %p286 = scmp.eq.s32.totalorder %s25, 0
    %p287 = por %p285, %p286
    %p288 = scmp.ne.s32.totalorder %s274, %s275
    %p289 = scmp.eq.s32.totalorder %s26, 1
    %p290 = por %p288, %p289
    %p292 = scmp.ne.s32.totalorder %s275, %s291
    %p293 = scmp.eq.s32.totalorder %s26, 0
    %p294 = por %p292, %p293
    %p295 = scmp.le.s32.totalorder 1, %s20
    %p296 = scmp.lt.s32.totalorder %s20, 3
    %p297 = pnand %p295, %p296
    %p298 = pneg %p297
    // Predicated region
    $region9: #{multi_head_convnet_forward.1} parent=5 // pred_check
      _
    $region10: #{multi_head_convnet_forward.1} parent=5 // pred_check_branch
      %300 = sbr.rel (%p297) target = $region12
    $region11: #{multi_head_convnet_forward.1} parent=5 // pred_region
      %s301 = ssub.s32 %s20, 1
      // Predicated region
      $region13: #{multi_head_convnet_forward.1} parent=11 // pred_check
        %p302 = pneg %p67
      $region14: #{multi_head_convnet_forward.1} parent=11 // pred_check_branch
        %304 = sbr.rel (%p302) target = $region16
      $region15: #{multi_head_convnet_forward.1} parent=11 // pred_region
        _
      $region16: #{multi_head_convnet_forward.1} parent=11 // pred_fallthru
        _
      // Predicated region
      $region17: #{multi_head_convnet_forward.1} parent=11 // pred_check
        %p305 = pneg %p88
      $region18: #{multi_head_convnet_forward.1} parent=11 // pred_check_branch
        %307 = sbr.rel (%p305) target = $region20
      $region19: #{multi_head_convnet_forward.1} parent=11 // pred_region
        _
      $region20: #{multi_head_convnet_forward.1} parent=11 // pred_fallthru
        _
      // Predicated region
      $region21: #{multi_head_convnet_forward.1} parent=11 // pred_check
        %p308 = pneg %p109
      $region22: #{multi_head_convnet_forward.1} parent=11 // pred_check_branch
        %310 = sbr.rel (%p308) target = $region24
      $region23: #{multi_head_convnet_forward.1} parent=11 // pred_region
        _
      $region24: #{multi_head_convnet_forward.1} parent=11 // pred_fallthru
        _
      // Predicated region
      $region25: #{multi_head_convnet_forward.1} parent=11 // pred_check
        %p311 = pneg %p130
      $region26: #{multi_head_convnet_forward.1} parent=11 // pred_check_branch
        %313 = sbr.rel (%p311) target = $region28
      $region27: #{multi_head_convnet_forward.1} parent=11 // pred_region
        _
      $region28: #{multi_head_convnet_forward.1} parent=11 // pred_fallthru
        _
      // Predicated region
      $region29: #{multi_head_convnet_forward.1} parent=11 // pred_check
        %p314 = pneg %p151
      $region30: #{multi_head_convnet_forward.1} parent=11 // pred_check_branch
        %316 = sbr.rel (%p314) target = $region32
      $region31: #{multi_head_convnet_forward.1} parent=11 // pred_region
        _
      $region32: #{multi_head_convnet_forward.1} parent=11 // pred_fallthru
        _
      // Predicated region
      $region33: #{multi_head_convnet_forward.1} parent=11 // pred_check
        %p317 = pneg %p172
      $region34: #{multi_head_convnet_forward.1} parent=11 // pred_check_branch
        %319 = sbr.rel (%p317) target = $region36
      $region35: #{multi_head_convnet_forward.1} parent=11 // pred_region
        _
      $region36: #{multi_head_convnet_forward.1} parent=11 // pred_fallthru
        _
      // Predicated region
      $region37: #{multi_head_convnet_forward.1} parent=11 // pred_check
        %p320 = pneg %p193
      $region38: #{multi_head_convnet_forward.1} parent=11 // pred_check_branch
        %322 = sbr.rel (%p320) target = $region40
      $region39: #{multi_head_convnet_forward.1} parent=11 // pred_region
        _
      $region40: #{multi_head_convnet_forward.1} parent=11 // pred_fallthru
        _
      // Predicated region
      $region41: #{multi_head_convnet_forward.1} parent=11 // pred_check
        %p323 = pneg %p214
      $region42: #{multi_head_convnet_forward.1} parent=11 // pred_check_branch
        %325 = sbr.rel (%p323) target = $region44
      $region43: #{multi_head_convnet_forward.1} parent=11 // pred_region
        _
      $region44: #{multi_head_convnet_forward.1} parent=11 // pred_fallthru
        _
      // Predicated region
      $region45: #{multi_head_convnet_forward.1} parent=11 // pred_check
        %p326 = pneg %p235
      $region46: #{multi_head_convnet_forward.1} parent=11 // pred_check_branch
        %328 = sbr.rel (%p326) target = $region48
      $region47: #{multi_head_convnet_forward.1} parent=11 // pred_region
        _
      $region48: #{multi_head_convnet_forward.1} parent=11 // pred_fallthru
        _
    $region12: #{multi_head_convnet_forward.1} parent=5 // pred_fallthru
      _
    %p329 = scmp.lt.s32.totalorder %s20, 2
    // Predicated region
    $region49: #{multi_head_convnet_forward.1} parent=5 // pred_check
      %p330 = pneg %p329
    $region50: #{multi_head_convnet_forward.1} parent=5 // pred_check_branch
      %332 = sbr.rel (%p330) target = $region52
    $region51: #{multi_head_convnet_forward.1} parent=5 // pred_region
      // Predicated region
      $region53: #{multi_head_convnet_forward.1} parent=51 // pred_check
        %p333 = pneg %p40
      $region54: #{multi_head_convnet_forward.1} parent=51 // pred_check_branch
        %335 = sbr.rel (%p333) target = $region56
      $region55: #{multi_head_convnet_forward.1} parent=51 // pred_region
        %p336 = scmp.lt.s32.totalorder %s20, 1
        %s337 = scalar_select %p336, %s20, 1
        %s338 = smul.addr %s337, 20
        %s339 = smul.addr %s338, 4
        %s340 = scalar_lea.vmem %s0, %s339
      $region56: #{multi_head_convnet_forward.1} parent=51 // pred_fallthru
        _
    $region52: #{multi_head_convnet_forward.1} parent=5 // pred_fallthru
      _
    %p341 = scmp.le.s32.totalorder 1, %s20
    %p342 = scmp.lt.s32.totalorder %s20, 3
    %p343 = pnand %p341, %p342
    %p344 = pneg %p343
    // Predicated region
    $region57: #{multi_head_convnet_forward.1} parent=5 // pred_check
      _
    $region58: #{multi_head_convnet_forward.1} parent=5 // pred_check_branch
      %346 = sbr.rel (%p343) target = $region60
    $region59: #{multi_head_convnet_forward.1} parent=5 // pred_region
      %s347 = ssub.s32 %s20, 1
      %p348 = scmp.lt.s32.totalorder %s25, 1
      %s349 = scalar_select %p348, %s25, 1
      %s350 = smul.addr %s349, 20
      %s351 = smul.addr %s350, 4
      %s352 = scalar_lea.vmem %s0, %s351
      %p353 = pneg %p46
      %p354 = pneg %p43
      %p355 = pneg %p67
      %p356 = pneg %p64
      %p357 = pneg %p88
      %p358 = pneg %p85
      %p359 = pneg %p109
      %p360 = pneg %p106
      %p361 = pneg %p130
      %p362 = pneg %p127
      %p363 = pneg %p151
      %p364 = pneg %p148
      %p365 = pneg %p172
      %p366 = pneg %p169
      %p367 = pneg %p193
      %p368 = pneg %p190
      %p369 = pneg %p214
      %p370 = pneg %p211
      %p371 = pneg %p235
      %p372 = pneg %p232
      %p373 = pneg %p261
      %p374 = pneg %p258
      %p375 = scmp.lt.s32.totalorder %s25, 1
      %s376 = scalar_select %p375, %s25, 1
      %s377 = smul.addr %s376, 4
      %s378 = scalar_lea.vmem %s10, %s377
      %p379 = pneg %p287
      %p380 = pneg %p284
      %p381 = scmp.lt.s32.totalorder %s25, 1
      %s382 = scalar_select %p381, %s25, 1
      %s383 = scalar_lea.vmem %s11, %s382
      %p384 = scmp.lt.s32.totalorder %s25, 1
      %s385 = scalar_select %p384, %s25, 1
      %s386 = smul.addr %s385, 20
      %s387 = smul.addr %s386, 4
      %s388 = scalar_lea.vmem %s0, %s387
      %p389 = scmp.lt.s32.totalorder %s25, 1
      %s390 = scalar_select %p389, %s25, 1
      %s391 = smul.addr %s390, 4
      %s392 = scalar_lea.vmem %s10, %s391
      %p393 = scmp.lt.s32.totalorder %s25, 1
      %s394 = scalar_select %p393, %s25, 1
      %s395 = scalar_lea.vmem %s11, %s394
      %v397 = vld [vmem:[%s1] sm:$0xf]
      %v398 = vld [vmem:[%s1 + $0x4] sm:$0xf]
      %v399 = vld [vmem:[%s1 + $0x8] sm:$0xf]
      %v400 = vld [vmem:[%s1 + $0xc] sm:$0xf]
      %v401 = vld [vmem:[%s1 + $0x10] sm:$0xf]
      %v402 = vld [vmem:[%s1 + $0x14] sm:$0xf]
      %v403 = vld [vmem:[%s1 + $0x18] sm:$0xf]
      %v404 = vld [vmem:[%s1 + $0x1c] sm:$0xf]
      %v405 = vld [vmem:[%s388] sm:$0xff]
      %v406 = vld [vmem:[%s388 + $0x8] sm:$0xff]
      %v407 = vld [vmem:[%s388 + $0x10] sm:$0xff]
      %v408 = vld [vmem:[%s388 + $0x18] sm:$0xff]
      %v409 = vld [vmem:[%s388 + $0x20] sm:$0xff]
      %v410 = vld [vmem:[%s388 + $0x28] sm:$0xff]
      %v411 = vld [vmem:[%s388 + $0x30] sm:$0xff]
      %v412 = vld [vmem:[%s388 + $0x38] sm:$0xff]
      %v413 = vld [vmem:[%s388 + $0x40] sm:$0x33]
      %v414 = vld [vmem:[%s388 + $0x48] sm:$0x33]
      %v423 = vunpack.c.l.b16 %v397
      %v424 = vunpack.c.l.b16 %v398
      %v425 = vunpack.c.l.b16 %v399
      %v426 = vunpack.c.l.b16 %v400
      %v427 = vunpack.c.l.b16 %v401
      %v428 = vunpack.c.l.b16 %v402
      %v429 = vunpack.c.l.b16 %v403
      %v430 = vunpack.c.l.b16 %v404
      %v431 = vpack.c.b16 %v424, %v423
      %v432 = vpack.c.b16 %v426, %v425
      %v433 = vpack.c.b16 %v428, %v427
      %v434 = vpack.c.b16 %v430, %v429
      %v445 = vunpack.c.l.b16 %v405
      %v446 = vunpack.c.h.b16 %v405
      %v447 = vunpack.c.l.b16 %v406
      %v448 = vunpack.c.h.b16 %v406
      %v449 = vunpack.c.l.b16 %v407
      %v450 = vunpack.c.h.b16 %v407
      %v451 = vunpack.c.l.b16 %v408
      %v452 = vunpack.c.h.b16 %v408
      %v453 = vunpack.c.l.b16 %v409
      %v454 = vunpack.c.h.b16 %v409
      %v455 = vunpack.c.l.b16 %v410
      %v456 = vunpack.c.h.b16 %v410
      %v457 = vunpack.c.l.b16 %v411
      %v458 = vunpack.c.h.b16 %v411
      %v459 = vunpack.c.l.b16 %v412
      %v460 = vunpack.c.h.b16 %v412
      %v461 = vunpack.c.l.b16 %v413
      %v462 = vunpack.c.h.b16 %v413
      %v463 = vunpack.c.l.b16 %v414
      %v464 = vunpack.c.h.b16 %v414
      %v465 = vpack.c.b16 %v449, %v445
      %v466 = vpack.c.b16 %v450, %v446
      %v467 = vpack.c.b16 %v451, %v447
      %v468 = vpack.c.b16 %v452, %v448
      %v469 = vpack.c.b16 %v457, %v453
      %v470 = vpack.c.b16 %v458, %v454
      %v471 = vpack.c.b16 %v459, %v455
      %v472 = vpack.c.b16 %v460, %v456
      %v473 = vpack.c.b16 %v461, %v461
      %v474 = vpack.c.b16 %v462, %v462
      %v475 = vpack.c.b16 %v463, %v463
      %v476 = vpack.c.b16 %v464, %v464
      %vm485 = vcmask 293888
      %v487 = vsel %vm485, %v431, 0
      %v490 = vsel %vm485, %v432, 0
      %v493 = vsel %vm485, %v433, 0
      %v496 = vsel %vm485, %v434, 0
      %vm498 = vcmask 1041408
      %v500 = vsel %vm498, %v473, 0
      %v503 = vsel %vm498, %v474, 0
      %v506 = vsel %vm498, %v475, 0
      %v509 = vsel %vm498, %v476, 0
      %511 = vmatprep.subr.bf16.mxu0 %v466
      %512 = vmatpush1.bf16.msra.mxu0 %v465
      %513 = vmatprep.subr.bf16.mxu0 %v470
      %514 = vmatpush1.bf16.msra.mxu0 %v469
      %515 = vmatprep.subr.bf16.mxu0 %v503
      %516 = vmatpush1.bf16.msra.mxu0 %v500
      %517 = vmatprep.subr.bf16.mxu0 0
      %518 = vmatpush1.bf16.msra.mxu0 0
      %519 = vmatprep.subr.bf16.mxu0 0
      %520 = vmatpush1.bf16.msra.mxu0 0
      %521 = vmatprep.subr.bf16.mxu0 0
      %522 = vmatpush1.bf16.msra.mxu0 0
      %523 = vmatprep.subr.bf16.mxu0 0
      %524 = vmatpush1.bf16.msra.mxu0 0
      %525 = vmatprep.subr.bf16.mxu0 0
      %526 = vmatpush1.bf16.msra.mxu0 0
      %527 = vmatprep.subr.bf16.mxu0 0
      %528 = vmatpush1.bf16.msra.mxu0 0
      %529 = vmatprep.subr.bf16.mxu0 0
      %530 = vmatpush1.bf16.msra.mxu0 0
      %531 = vmatprep.subr.bf16.mxu0 0
      %532 = vmatpush1.bf16.msra.mxu0 0
      %533 = vmatprep.subr.bf16.mxu0 0
      %534 = vmatpush1.bf16.msra.mxu0 0
      %535 = vmatprep.subr.bf16.mxu0 0
      %536 = vmatpush1.bf16.msra.mxu0 0
      %537 = vmatprep.subr.bf16.mxu0 0
      %538 = vmatpush1.bf16.msra.mxu0 0
      %539 = vmatprep.subr.bf16.mxu0 0
      %540 = vmatpush1.bf16.msra.mxu0 0
      %541 = vmatprep.subr.bf16.mxu0 0
      %542 = vmatpush1.bf16.msra.mxu0 0
      %543 = vmatprep.mubr.bf16.mxu0 0
      %544 = vmatmul.mubr.bf16.gmra.mrb[0].mxu0 %v487
      %v545 = vpop.f32.mrb[0].mxu0
      %v546 = vadd.f32 0.0, %v545
      %v547 = vpop.f32.mrb[0].mxu0
      %v548 = vadd.f32 0.0, %v547
      %v549 = vpop.f32.mrb[0].mxu0
      %v550 = vadd.f32 0.0, %v549
      %v551 = vpop.f32.mrb[0].mxu0
      %v552 = vadd.f32 0.0, %v551
      %553 = vmatprep.mubr.bf16.mxu0 0
      %554 = vmatmul.mubr.bf16.gmra.mrb[0].mxu0 %v490
      %v555 = vpop.f32.mrb[0].mxu0
      %v556 = vadd.f32 0.0, %v555
      %v557 = vpop.f32.mrb[0].mxu0
      %v558 = vadd.f32 0.0, %v557
      %v559 = vpop.f32.mrb[0].mxu0
      %v560 = vadd.f32 0.0, %v559
      %v561 = vpop.f32.mrb[0].mxu0
      %v562 = vadd.f32 0.0, %v561
      %563 = vmatprep.mubr.bf16.mxu0 0
      %564 = vmatmul.mubr.bf16.gmra.mrb[0].mxu0 %v493
      %v565 = vpop.f32.mrb[0].mxu0
      %v566 = vadd.f32 0.0, %v565
      %v567 = vpop.f32.mrb[0].mxu0
      %v568 = vadd.f32 0.0, %v567
      %v569 = vpop.f32.mrb[0].mxu0
      %v570 = vadd.f32 0.0, %v569
      %v571 = vpop.f32.mrb[0].mxu0
      %v572 = vadd.f32 0.0, %v571
      %573 = vmatprep.mubr.bf16.mxu0 0
      %574 = vmatmul.mubr.bf16.gmra.mrb[0].mxu0 %v496
      %v575 = vpop.f32.mrb[0].mxu0
      %v576 = vadd.f32 0.0, %v575
      %v577 = vpop.f32.mrb[0].mxu0
      %v578 = vadd.f32 0.0, %v577
      %v579 = vpop.f32.mrb[0].mxu0
      %v580 = vadd.f32 0.0, %v579
      %v581 = vpop.f32.mrb[0].mxu0
      %v582 = vadd.f32 0.0, %v581
      %583 = vdwg.mxu0
      %584 = vmatprep.subr.bf16.mxu0 %v468
      %585 = vmatpush1.bf16.msra.mxu0 %v467
      %586 = vmatprep.subr.bf16.mxu0 %v472
      %587 = vmatpush1.bf16.msra.mxu0 %v471
      %588 = vmatprep.subr.bf16.mxu0 %v509
      %589 = vmatpush1.bf16.msra.mxu0 %v506
      %590 = vmatprep.subr.bf16.mxu0 0
      %591 = vmatpush1.bf16.msra.mxu0 0
      %592 = vmatprep.subr.bf16.mxu0 0
      %593 = vmatpush1.bf16.msra.mxu0 0
      %594 = vmatprep.subr.bf16.mxu0 0
      %595 = vmatpush1.bf16.msra.mxu0 0
      %596 = vmatprep.subr.bf16.mxu0 0
      %597 = vmatpush1.bf16.msra.mxu0 0
      %598 = vmatprep.subr.bf16.mxu0 0
      %599 = vmatpush1.bf16.msra.mxu0 0
      %600 = vmatprep.subr.bf16.mxu0 0
      %601 = vmatpush1.bf16.msra.mxu0 0
      %602 = vmatprep.subr.bf16.mxu0 0
      %603 = vmatpush1.bf16.msra.mxu0 0
      %604 = vmatprep.subr.bf16.mxu0 0
      %605 = vmatpush1.bf16.msra.mxu0 0
      %606 = vmatprep.subr.bf16.mxu0 0
      %607 = vmatpush1.bf16.msra.mxu0 0
      %608 = vmatprep.subr.bf16.mxu0 0
      %609 = vmatpush1.bf16.msra.mxu0 0
      %610 = vmatprep.subr.bf16.mxu0 0
      %611 = vmatpush1.bf16.msra.mxu0 0
      %612 = vmatprep.subr.bf16.mxu0 0
      %613 = vmatpush1.bf16.msra.mxu0 0
      %614 = vmatprep.subr.bf16.mxu0 0
      %615 = vmatpush1.bf16.msra.mxu0 0
      %616 = vmatprep.mubr.bf16.mxu0 0
      %617 = vmatmul.mubr.bf16.gmra.mrb[0].mxu0 %v487
      %v618 = vpop.f32.mrb[0].mxu0
      %v619 = vadd.f32 0.0, %v618
      %v620 = vpop.f32.mrb[0].mxu0
      %v621 = vadd.f32 0.0, %v620
      %v622 = vpop.f32.mrb[0].mxu0
      %v623 = vadd.f32 0.0, %v622
      %v624 = vpop.f32.mrb[0].mxu0
      %v625 = vadd.f32 0.0, %v624
      %626 = vmatprep.mubr.bf16.mxu0 0
      %627 = vmatmul.mubr.bf16.gmra.mrb[0].mxu0 %v490
      %v628 = vpop.f32.mrb[0].mxu0
      %v629 = vadd.f32 0.0, %v628
      %v630 = vpop.f32.mrb[0].mxu0
      %v631 = vadd.f32 0.0, %v630
      %v632 = vpop.f32.mrb[0].mxu0
      %v633 = vadd.f32 0.0, %v632
      %v634 = vpop.f32.mrb[0].mxu0
      %v635 = vadd.f32 0.0, %v634
      %636 = vmatprep.mubr.bf16.mxu0 0
      %637 = vmatmul.mubr.bf16.gmra.mrb[0].mxu0 %v493
      %v638 = vpop.f32.mrb[0].mxu0
      %v639 = vadd.f32 0.0, %v638
      %v640 = vpop.f32.mrb[0].mxu0
      %v641 = vadd.f32 0.0, %v640
      %v642 = vpop.f32.mrb[0].mxu0
      %v643 = vadd.f32 0.0, %v642
      %v644 = vpop.f32.mrb[0].mxu0
      %v645 = vadd.f32 0.0, %v644
      %646 = vmatprep.mubr.bf16.mxu0 0
      %647 = vmatmul.mubr.bf16.gmra.mrb[0].mxu0 %v496
      %v648 = vpop.f32.mrb[0].mxu0
      %v649 = vadd.f32 0.0, %v648
      %v650 = vpop.f32.mrb[0].mxu0
      %v651 = vadd.f32 0.0, %v650
      %v652 = vpop.f32.mrb[0].mxu0
      %v653 = vadd.f32 0.0, %v652
      %v654 = vpop.f32.mrb[0].mxu0
      %v655 = vadd.f32 0.0, %v654
      %656 = vdwg.mxu0
      %v657 = vmax.f32 %v546, %v556
      %v658 = vmax.f32 %v548, %v558
      %v659 = vmax.f32 %v619, %v629
      %v660 = vmax.f32 %v621, %v631
      %v661 = vmax.f32 %v550, %v560
      %v662 = vmax.f32 %v552, %v562
      %v663 = vmax.f32 %v623, %v633
      %v664 = vmax.f32 %v625, %v635
      %v665 = vmax.f32 %v566, %v576
      %v666 = vmax.f32 %v568, %v578
      %v667 = vmax.f32 %v639, %v649
      %v668 = vmax.f32 %v641, %v651
      %v669 = vmax.f32 %v570, %v580
      %v670 = vmax.f32 %v572, %v582
      %v671 = vmax.f32 %v643, %v653
      %v672 = vmax.f32 %v645, %v655
      %v673 = vmax.f32 %v657, %v665
      %v674 = vmax.f32 %v658, %v666
      %v675 = vmax.f32 %v659, %v667
      %v676 = vmax.f32 %v660, %v668
      %v677 = vmax.f32 %v661, %v669
      %v678 = vmax.f32 %v662, %v670
      %v679 = vmax.f32 %v663, %v671
      %v680 = vmax.f32 %v664, %v672
      %v681 = vld [vmem:[%s2] sm:$0xff]
      %v682 = vld [vmem:[%s2 + $0x8] sm:$0xff]
      %684 = vset.pattern.permute.xlu0 0
      %685 = vperm.xlu0 %684, %v681
      %v686 = vpop.permute.xlu0 %685
      %689 = vset.pattern.permute.xlu0 0
      %690 = vperm.xlu0 %689, %v682
      %v691 = vpop.permute.xlu0 %690
      %v693 = vadd.f32 %v673, %v686
      %v694 = vadd.f32 %v674, %v686
      %v695 = vadd.f32 %v675, %v686
      %v696 = vadd.f32 %v676, %v686
      %v697 = vadd.f32 %v677, %v691
      %v698 = vadd.f32 %v678, %v691
      %v699 = vadd.f32 %v679, %v691
      %v700 = vadd.f32 %v680, %v691
      %v701 = vmax.f32 %v693, 0.0
      %v702 = vmax.f32 %v694, 0.0
      %v703 = vmax.f32 %v695, 0.0
      %v704 = vmax.f32 %v696, 0.0
      %v705 = vmax.f32 %v697, 0.0
      %v706 = vmax.f32 %v698, 0.0
      %v707 = vmax.f32 %v699, 0.0
      %v708 = vmax.f32 %v700, 0.0
      %v709 = vld [vmem:[%s3] sm:$0xf]
      %v711 = vlaneseq
      %v712 = vshrl.u32 %v711, 7
      %v713 = vsub.s32 0, %v712
      %v714 = vrot.slane %v709, %v713
      %v715 = vlaneseq
      %v716 = vshrl.u32 %v715, 7
      %v717 = vsub.s32 1, %v716
      %v718 = vrot.slane %v709, %v717
      %v719 = vlaneseq
      %v720 = vshrl.u32 %v719, 7
      %v721 = vsub.s32 2, %v720
      %v722 = vrot.slane %v709, %v721
      %v723 = vlaneseq
      %v724 = vshrl.u32 %v723, 7
      %v725 = vsub.s32 3, %v724
      %v726 = vrot.slane %v709, %v725
      %v731 = vmul.f32 %v701, %v714
      %v732 = vmul.f32 %v702, %v718
      %v733 = vmul.f32 %v703, %v722
      %v734 = vmul.f32 %v704, %v726
      %v735 = vmul.f32 %v705, %v714
      %v736 = vmul.f32 %v706, %v718
      %v737 = vmul.f32 %v707, %v722
      %v738 = vmul.f32 %v708, %v726
      %739 = vst [vmem:[#allocation2] sm:$0xff] 0
      %740 = vst [vmem:[#allocation2 + $0x8] sm:$0xff] 0
      %741 = vst [vmem:[#allocation2 + $0x10] sm:$0xff] 0
      %742 = vst [vmem:[#allocation2 + $0x18] sm:$0xff] 0
      %v743 = vpack.c.bf16 %v735, %v731
      %745 = vrot.lane.b32.xlu0 %v743, 7
      %v746 = vpop.permute.xlu0 %745
      %vm748 = vcmask 252984
      %749 = vst.msk [vmem:[#allocation2] sm:$0xff] %vm748, %v746
      %v750 = vpack.c.bf16 %v736, %v732
      %752 = vrot.lane.b32.xlu0 %v750, 7
      %v753 = vpop.permute.xlu0 %752
      %755 = vst.msk [vmem:[#allocation2 + $0x8] sm:$0xff] %vm748, %v753
      %v756 = vpack.c.bf16 %v737, %v733
      %758 = vrot.lane.b32.xlu0 %v756, 7
      %v759 = vpop.permute.xlu0 %758
      %761 = vst.msk [vmem:[#allocation2 + $0x10] sm:$0xff] %vm748, %v759
      %v762 = vpack.c.bf16 %v738, %v734
      %764 = vrot.lane.b32.xlu0 %v762, 7
      %v765 = vpop.permute.xlu0 %764
      %767 = vst.msk [vmem:[#allocation2 + $0x18] sm:$0xff] %vm748, %v765
      %v768 = vld [vmem:[#allocation2] sm:$0xff]
      %v769 = vld [vmem:[#allocation2 + $0x8] sm:$0xff]
      %v770 = vld [vmem:[#allocation2 + $0x10] sm:$0xff]
      %v771 = vld [vmem:[#allocation2 + $0x18] sm:$0xff]
      %776 = vrot.lane.b32.xlu0 %v768, 127
      %v777 = vpop.permute.xlu0 %776
      %778 = vrot.lane.b32.xlu0 %v769, 127
      %v779 = vpop.permute.xlu0 %778
      %780 = vrot.lane.b32.xlu0 %v770, 127
      %v781 = vpop.permute.xlu0 %780
      %782 = vrot.lane.b32.xlu0 %v771, 127
      %v783 = vpop.permute.xlu0 %782
      %788 = vrot.lane.b32.xlu0 %v768, 126
      %v789 = vpop.permute.xlu0 %788
      %790 = vrot.lane.b32.xlu0 %v769, 126
      %v791 = vpop.permute.xlu0 %790
      %792 = vrot.lane.b32.xlu0 %v770, 126
      %v793 = vpop.permute.xlu0 %792
      %794 = vrot.lane.b32.xlu0 %v771, 126
      %v795 = vpop.permute.xlu0 %794
      %800 = vrot.lane.b32.xlu0 %v768, 122
      %v801 = vpop.permute.xlu0 %800
      %802 = vrot.lane.b32.xlu0 %v769, 122
      %v803 = vpop.permute.xlu0 %802
      %804 = vrot.lane.b32.xlu0 %v770, 122
      %v805 = vpop.permute.xlu0 %804
      %806 = vrot.lane.b32.xlu0 %v771, 122
      %v807 = vpop.permute.xlu0 %806
      %812 = vrot.lane.b32.xlu0 %v768, 121
      %v813 = vpop.permute.xlu0 %812
      %814 = vrot.lane.b32.xlu0 %v769, 121
      %v815 = vpop.permute.xlu0 %814
      %816 = vrot.lane.b32.xlu0 %v770, 121
      %v817 = vpop.permute.xlu0 %816
      %818 = vrot.lane.b32.xlu0 %v771, 121
      %v819 = vpop.permute.xlu0 %818
      %824 = vrot.lane.b32.xlu0 %v768, 120
      %v825 = vpop.permute.xlu0 %824
      %826 = vrot.lane.b32.xlu0 %v769, 120
      %v827 = vpop.permute.xlu0 %826
      %828 = vrot.lane.b32.xlu0 %v770, 120
      %v829 = vpop.permute.xlu0 %828
      %830 = vrot.lane.b32.xlu0 %v771, 120
      %v831 = vpop.permute.xlu0 %830
      %836 = vrot.lane.b32.xlu0 %v768, 116
      %v837 = vpop.permute.xlu0 %836
      %838 = vrot.lane.b32.xlu0 %v769, 116
      %v839 = vpop.permute.xlu0 %838
      %840 = vrot.lane.b32.xlu0 %v770, 116
      %v841 = vpop.permute.xlu0 %840
      %842 = vrot.lane.b32.xlu0 %v771, 116
      %v843 = vpop.permute.xlu0 %842
      %848 = vrot.lane.b32.xlu0 %v768, 115
      %v849 = vpop.permute.xlu0 %848
      %850 = vrot.lane.b32.xlu0 %v769, 115
      %v851 = vpop.permute.xlu0 %850
      %852 = vrot.lane.b32.xlu0 %v770, 115
      %v853 = vpop.permute.xlu0 %852
      %854 = vrot.lane.b32.xlu0 %v771, 115
      %v855 = vpop.permute.xlu0 %854
      %860 = vrot.lane.b32.xlu0 %v768, 114
      %v861 = vpop.permute.xlu0 %860
      %862 = vrot.lane.b32.xlu0 %v769, 114
      %v863 = vpop.permute.xlu0 %862
      %864 = vrot.lane.b32.xlu0 %v770, 114
      %v865 = vpop.permute.xlu0 %864
      %866 = vrot.lane.b32.xlu0 %v771, 114
      %v867 = vpop.permute.xlu0 %866
      %v872 = vld [vmem:[%s4] sm:$0xff]
      %v873 = vld [vmem:[%s4 + $0x8] sm:$0xff]
      %v874 = vld [vmem:[%s4 + $0x10] sm:$0xf]
      %v875 = vld [vmem:[%s4 + $0x14] sm:$0xff]
      %v876 = vld [vmem:[%s4 + $0x1c] sm:$0xff]
      %v877 = vld [vmem:[%s4 + $0x24] sm:$0xf]
      %v878 = vld [vmem:[%s4 + $0x28] sm:$0xff]
      %v879 = vld [vmem:[%s4 + $0x30] sm:$0xff]
      %v880 = vld [vmem:[%s4 + $0x38] sm:$0xf]
      %v881 = vld [vmem:[%s4 + $0x3c] sm:$0xff]
      %v882 = vld [vmem:[%s4 + $0x44] sm:$0xff]
      %v883 = vld [vmem:[%s4 + $0x4c] sm:$0xf]
      %v884 = vld [vmem:[%s4 + $0x50] sm:$0xff]
      %v885 = vld [vmem:[%s4 + $0x58] sm:$0xff]
      %v886 = vld [vmem:[%s4 + $0x60] sm:$0xf]
      %v887 = vld [vmem:[%s4 + $0x64] sm:$0xff]
      %v888 = vld [vmem:[%s4 + $0x6c] sm:$0xff]
      %v889 = vld [vmem:[%s4 + $0x74] sm:$0xf]
      %v890 = vld [vmem:[%s4 + $0x78] sm:$0xff]
      %v891 = vld [vmem:[%s4 + $0x80] sm:$0xff]
      %v892 = vld [vmem:[%s4 + $0x88] sm:$0xf]
      %v893 = vld [vmem:[%s4 + $0x8c] sm:$0xff]
      %v894 = vld [vmem:[%s4 + $0x94] sm:$0xff]
      %v895 = vld [vmem:[%s4 + $0x9c] sm:$0xf]
      %v896 = vld [vmem:[%s4 + $0xa0] sm:$0xff]
      %v897 = vld [vmem:[%s4 + $0xa8] sm:$0xff]
      %v898 = vld [vmem:[%s4 + $0xb0] sm:$0xf]
      %v899 = vld [vmem:[%s4 + $0xb4] sm:$0xff]
      %v900 = vld [vmem:[%s4 + $0xbc] sm:$0xff]
      %v901 = vld [vmem:[%s4 + $0xc4] sm:$0xf]
      %v902 = vld [vmem:[%s4 + $0xc8] sm:$0xff]
      %v903 = vld [vmem:[%s4 + $0xd0] sm:$0xff]
      %v904 = vld [vmem:[%s4 + $0xd8] sm:$0xf]
      %v905 = vld [vmem:[%s4 + $0xdc] sm:$0xff]
      %v906 = vld [vmem:[%s4 + $0xe4] sm:$0xff]
      %v907 = vld [vmem:[%s4 + $0xec] sm:$0xf]
      %v908 = vld [vmem:[%s4 + $0xf0] sm:$0xff]
      %v909 = vld [vmem:[%s4 + $0xf8] sm:$0xff]
      %v910 = vld [vmem:[%s4 + $0x100] sm:$0xf]
      %v911 = vld [vmem:[%s4 + $0x104] sm:$0xff]
      %v912 = vld [vmem:[%s4 + $0x10c] sm:$0xff]
      %v913 = vld [vmem:[%s4 + $0x114] sm:$0xf]
      %v914 = vld [vmem:[%s4 + $0x118] sm:$0xff]
      %v915 = vld [vmem:[%s4 + $0x120] sm:$0xff]
      %v916 = vld [vmem:[%s4 + $0x128] sm:$0xf]
      %v917 = vld [vmem:[%s4 + $0x12c] sm:$0xff]
      %v918 = vld [vmem:[%s4 + $0x134] sm:$0xff]
      %v919 = vld [vmem:[%s4 + $0x13c] sm:$0xf]
      %v968 = vunpack.c.l.b16 %v872
      %v969 = vunpack.c.h.b16 %v872
      %v970 = vunpack.c.l.b16 %v873
      %v971 = vunpack.c.h.b16 %v873
      %v972 = vunpack.c.l.b16 %v874
      %v973 = vunpack.c.l.b16 %v875
      %v974 = vunpack.c.h.b16 %v875
      %v975 = vunpack.c.l.b16 %v876
      %v976 = vunpack.c.h.b16 %v876
      %v977 = vunpack.c.l.b16 %v877
      %v978 = vunpack.c.l.b16 %v878
      %v979 = vunpack.c.h.b16 %v878
      %v980 = vunpack.c.l.b16 %v879
      %v981 = vunpack.c.h.b16 %v879
      %v982 = vunpack.c.l.b16 %v880
      %v983 = vunpack.c.l.b16 %v881
      %v984 = vunpack.c.h.b16 %v881
      %v985 = vunpack.c.l.b16 %v882
      %v986 = vunpack.c.h.b16 %v882
      %v987 = vunpack.c.l.b16 %v883
      %v988 = vunpack.c.l.b16 %v884
      %v989 = vunpack.c.h.b16 %v884
      %v990 = vunpack.c.l.b16 %v885
      %v991 = vunpack.c.h.b16 %v885
      %v992 = vunpack.c.l.b16 %v886
      %v993 = vunpack.c.l.b16 %v887
      %v994 = vunpack.c.h.b16 %v887
      %v995 = vunpack.c.l.b16 %v888
      %v996 = vunpack.c.h.b16 %v888
      %v997 = vunpack.c.l.b16 %v889
      %v998 = vunpack.c.l.b16 %v890
      %v999 = vunpack.c.h.b16 %v890
      %v1000 = vunpack.c.l.b16 %v891
      %v1001 = vunpack.c.h.b16 %v891
      %v1002 = vunpack.c.l.b16 %v892
      %v1003 = vunpack.c.l.b16 %v893
      %v1004 = vunpack.c.h.b16 %v893
      %v1005 = vunpack.c.l.b16 %v894
      %v1006 = vunpack.c.h.b16 %v894
      %v1007 = vunpack.c.l.b16 %v895
      %v1008 = vunpack.c.l.b16 %v896
      %v1009 = vunpack.c.h.b16 %v896
      %v1010 = vunpack.c.l.b16 %v897
      %v1011 = vunpack.c.h.b16 %v897
      %v1012 = vunpack.c.l.b16 %v898
      %v1013 = vunpack.c.l.b16 %v899
      %v1014 = vunpack.c.h.b16 %v899
      %v1015 = vunpack.c.l.b16 %v900
      %v1016 = vunpack.c.h.b16 %v900
      %v1017 = vunpack.c.l.b16 %v901
      %v1018 = vunpack.c.l.b16 %v902
      %v1019 = vunpack.c.h.b16 %v902
      %v1020 = vunpack.c.l.b16 %v903
      %v1021 = vunpack.c.h.b16 %v903
      %v1022 = vunpack.c.l.b16 %v904
      %v1023 = vunpack.c.l.b16 %v905
      %v1024 = vunpack.c.h.b16 %v905
      %v1025 = vunpack.c.l.b16 %v906
      %v1026 = vunpack.c.h.b16 %v906
      %v1027 = vunpack.c.l.b16 %v907
      %v1028 = vunpack.c.l.b16 %v908
      %v1029 = vunpack.c.h.b16 %v908
      %v1030 = vunpack.c.l.b16 %v909
      %v1031 = vunpack.c.h.b16 %v909
      %v1032 = vunpack.c.l.b16 %v910
      %v1033 = vunpack.c.l.b16 %v911
      %v1034 = vunpack.c.h.b16 %v911
      %v1035 = vunpack.c.l.b16 %v912
      %v1036 = vunpack.c.h.b16 %v912
      %v1037 = vunpack.c.l.b16 %v913
      %v1038 = vunpack.c.l.b16 %v914
      %v1039 = vunpack.c.h.b16 %v914
      %v1040 = vunpack.c.l.b16 %v915
      %v1041 = vunpack.c.h.b16 %v915
      %v1042 = vunpack.c.l.b16 %v916
      %v1043 = vunpack.c.l.b16 %v917
      %v1044 = vunpack.c.h.b16 %v917
      %v1045 = vunpack.c.l.b16 %v918
      %v1046 = vunpack.c.h.b16 %v918
      %v1047 = vunpack.c.l.b16 %v919
      %v1048 = vpack.c.b16 %v973, %v968
      %v1049 = vpack.c.b16 %v974, %v969
      %v1050 = vpack.c.b16 %v975, %v970
      %v1051 = vpack.c.b16 %v976, %v971
      %v1052 = vpack.c.b16 %v977, %v972
      %v1053 = vpack.c.b16 %v983, %v978
      %v1054 = vpack.c.b16 %v984, %v979
      %v1055 = vpack.c.b16 %v985, %v980
      %v1056 = vpack.c.b16 %v986, %v981
      %v1057 = vpack.c.b16 %v987, %v982
      %v1058 = vpack.c.b16 %v993, %v988
      %v1059 = vpack.c.b16 %v994, %v989
      %v1060 = vpack.c.b16 %v995, %v990
      %v1061 = vpack.c.b16 %v996, %v991
      %v1062 = vpack.c.b16 %v997, %v992
      %v1063 = vpack.c.b16 %v1003, %v998
      %v1064 = vpack.c.b16 %v1004, %v999
      %v1065 = vpack.c.b16 %v1005, %v1000
      %v1066 = vpack.c.b16 %v1006, %v1001
      %v1067 = vpack.c.b16 %v1007, %v1002
      %v1068 = vpack.c.b16 %v1013, %v1008
      %v1069 = vpack.c.b16 %v1014, %v1009
      %v1070 = vpack.c.b16 %v1015, %v1010
      %v1071 = vpack.c.b16 %v1016, %v1011
      %v1072 = vpack.c.b16 %v1017, %v1012
      %v1073 = vpack.c.b16 %v1023, %v1018
      %v1074 = vpack.c.b16 %v1024, %v1019
      %v1075 = vpack.c.b16 %v1025, %v1020
      %v1076 = vpack.c.b16 %v1026, %v1021
      %v1077 = vpack.c.b16 %v1027, %v1022
      %v1078 = vpack.c.b16 %v1033, %v1028
      %v1079 = vpack.c.b16 %v1034, %v1029
      %v1080 = vpack.c.b16 %v1035, %v1030
      %v1081 = vpack.c.b16 %v1036, %v1031
      %v1082 = vpack.c.b16 %v1037, %v1032
      %v1083 = vpack.c.b16 %v1043, %v1038
      %v1084 = vpack.c.b16 %v1044, %v1039
      %v1085 = vpack.c.b16 %v1045, %v1040
      %v1086 = vpack.c.b16 %v1046, %v1041
      %v1087 = vpack.c.b16 %v1047, %v1042
      %vm1120 = vcmask 523264
      %v1122 = vsel %vm1120, %v1052, 0
      %v1125 = vsel %vm1120, %v1057, 0
      %v1128 = vsel %vm1120, %v1062, 0
      %v1131 = vsel %vm1120, %v1067, 0
      %v1134 = vsel %vm1120, %v1072, 0
      %v1137 = vsel %vm1120, %v1077, 0
      %v1140 = vsel %vm1120, %v1082, 0
      %v1143 = vsel %vm1120, %v1087, 0
      %1145 = vmatprep.subr.bf16.mxu0 0
      %1146 = vmatpush1.bf16.msra.mxu0 %v768
      %1147 = vmatprep.subr.bf16.mxu0 0
      %1148 = vmatpush1.bf16.msra.mxu0 %v769
      %1149 = vmatprep.subr.bf16.mxu0 0
      %1150 = vmatpush1.bf16.msra.mxu0 %v770
      %1151 = vmatprep.subr.bf16.mxu0 0
      %1152 = vmatpush1.bf16.msra.mxu0 %v771
      %1153 = vmatprep.subr.bf16.mxu0 0
      %1154 = vmatpush1.bf16.msra.mxu0 %v777
      %1155 = vmatprep.subr.bf16.mxu0 0
      %1156 = vmatpush1.bf16.msra.mxu0 %v779
      %1157 = vmatprep.subr.bf16.mxu0 0
      %1158 = vmatpush1.bf16.msra.mxu0 %v781
      %1159 = vmatprep.subr.bf16.mxu0 0
      %1160 = vmatpush1.bf16.msra.mxu0 %v783
      %1161 = vmatprep.subr.bf16.mxu0 0
      %1162 = vmatpush1.bf16.msra.mxu0 %v789
      %1163 = vmatprep.subr.bf16.mxu0 0
      %1164 = vmatpush1.bf16.msra.mxu0 %v791
      %1165 = vmatprep.subr.bf16.mxu0 0
      %1166 = vmatpush1.bf16.msra.mxu0 %v793
      %1167 = vmatprep.subr.bf16.mxu0 0
      %1168 = vmatpush1.bf16.msra.mxu0 %v795
      %1169 = vmatprep.subr.bf16.mxu0 0
      %1170 = vmatpush1.bf16.msra.mxu0 %v801
      %1171 = vmatprep.subr.bf16.mxu0 0
      %1172 = vmatpush1.bf16.msra.mxu0 %v803
      %1173 = vmatprep.subr.bf16.mxu0 0
      %1174 = vmatpush1.bf16.msra.mxu0 %v805
      %1175 = vmatprep.subr.bf16.mxu0 0
      %1176 = vmatpush1.bf16.msra.mxu0 %v807
      %1177 = vmatprep.mubr.bf16.mxu0 %v1049
      %1178 = vmatmul.mubr.bf16.gmra.mrb[0].mxu0 %v1048
      %v1179 = vpop.f32.mrb[0].mxu0
      %v1180 = vadd.f32 0.0, %v1179
      %v1181 = vpop.f32.mrb[0].mxu0
      %v1182 = vpop.f32.mrb[0].mxu0
      %v1183 = vadd.f32 0.0, %v1182
      %v1184 = vpop.f32.mrb[0].mxu0
      %1185 = vmatprep.mubr.bf16.mxu0 %v1054
      %1186 = vmatmul.mubr.bf16.gmra.mrb[0].mxu0 %v1053
      %v1187 = vpop.f32.mrb[0].mxu0
      %v1188 = vadd.f32 0.0, %v1187
      %v1189 = vpop.f32.mrb[0].mxu0
      %v1190 = vpop.f32.mrb[0].mxu0
      %v1191 = vadd.f32 0.0, %v1190
      %v1192 = vpop.f32.mrb[0].mxu0
      %1193 = vmatprep.mubr.bf16.mxu0 %v1059
      %1194 = vmatmul.mubr.bf16.gmra.mrb[0].mxu0 %v1058
      %v1195 = vpop.f32.mrb[0].mxu0
      %v1196 = vadd.f32 0.0, %v1195
      %v1197 = vpop.f32.mrb[0].mxu0
      %v1198 = vpop.f32.mrb[0].mxu0
      %v1199 = vadd.f32 0.0, %v1198
      %v1200 = vpop.f32.mrb[0].mxu0
      %1201 = vmatprep.mubr.bf16.mxu0 %v1064
      %1202 = vmatmul.mubr.bf16.gmra.mrb[0].mxu0 %v1063
      %v1203 = vpop.f32.mrb[0].mxu0
      %v1204 = vadd.f32 0.0, %v1203
      %v1205 = vpop.f32.mrb[0].mxu0
      %v1206 = vpop.f32.mrb[0].mxu0
      %v1207 = vadd.f32 0.0, %v1206
      %v1208 = vpop.f32.mrb[0].mxu0
      %1209 = vmatprep.mubr.bf16.mxu0 %v1069
      %1210 = vmatmul.mubr.bf16.gmra.mrb[0].mxu0 %v1068
      %v1211 = vpop.f32.mrb[0].mxu0
      %v1212 = vadd.f32 0.0, %v1211
      %v1213 = vpop.f32.mrb[0].mxu0
      %v1214 = vpop.f32.mrb[0].mxu0
      %v1215 = vadd.f32 0.0, %v1214
      %v1216 = vpop.f32.mrb[0].mxu0
      %1217 = vmatprep.mubr.bf16.mxu0 %v1074
      %1218 = vmatmul.mubr.bf16.gmra.mrb[0].mxu0 %v1073
      %v1219 = vpop.f32.mrb[0].mxu0
      %v1220 = vadd.f32 0.0, %v1219
      %v1221 = vpop.f32.mrb[0].mxu0
      %v1222 = vpop.f32.mrb[0].mxu0
      %v1223 = vadd.f32 0.0, %v1222
      %v1224 = vpop.f32.mrb[0].mxu0
      %1225 = vmatprep.mubr.bf16.mxu0 %v1079
      %1226 = vmatmul.mubr.bf16.gmra.mrb[0].mxu0 %v1078
      %v1227 = vpop.f32.mrb[0].mxu0
      %v1228 = vadd.f32 0.0, %v1227
      %v1229 = vpop.f32.mrb[0].mxu0
      %v1230 = vpop.f32.mrb[0].mxu0
      %v1231 = vadd.f32 0.0, %v1230
      %v1232 = vpop.f32.mrb[0].mxu0
      %1233 = vmatprep.mubr.bf16.mxu0 %v1084
      %1234 = vmatmul.mubr.bf16.gmra.mrb[0].mxu0 %v1083
      %v1235 = vpop.f32.mrb[0].mxu0
      %v1236 = vadd.f32 0.0, %v1235
      %v1237 = vpop.f32.mrb[0].mxu0
      %v1238 = vpop.f32.mrb[0].mxu0
      %v1239 = vadd.f32 0.0, %v1238
      %v1240 = vpop.f32.mrb[0].mxu0
      %1241 = vdwg.mxu0
      %1242 = vmatprep.subr.bf16.mxu0 0
      %1243 = vmatpush1.bf16.msra.mxu0 %v813
      %1244 = vmatprep.subr.bf16.mxu0 0
      %1245 = vmatpush1.bf16.msra.mxu0 %v815
      %1246 = vmatprep.subr.bf16.mxu0 0
      %1247 = vmatpush1.bf16.msra.mxu0 %v817
      %1248 = vmatprep.subr.bf16.mxu0 0
      %1249 = vmatpush1.bf16.msra.mxu0 %v819
      %1250 = vmatprep.subr.bf16.mxu0 0
      %1251 = vmatpush1.bf16.msra.mxu0 %v825
      %1252 = vmatprep.subr.bf16.mxu0 0
      %1253 = vmatpush1.bf16.msra.mxu0 %v827
      %1254 = vmatprep.subr.bf16.mxu0 0
      %1255 = vmatpush1.bf16.msra.mxu0 %v829
      %1256 = vmatprep.subr.bf16.mxu0 0
      %1257 = vmatpush1.bf16.msra.mxu0 %v831
      %1258 = vmatprep.subr.bf16.mxu0 0
      %1259 = vmatpush1.bf16.msra.mxu0 %v837
      %1260 = vmatprep.subr.bf16.mxu0 0
      %1261 = vmatpush1.bf16.msra.mxu0 %v839
      %1262 = vmatprep.subr.bf16.mxu0 0
      %1263 = vmatpush1.bf16.msra.mxu0 %v841
      %1264 = vmatprep.subr.bf16.mxu0 0
      %1265 = vmatpush1.bf16.msra.mxu0 %v843
      %1266 = vmatprep.subr.bf16.mxu0 0
      %1267 = vmatpush1.bf16.msra.mxu0 %v849
      %1268 = vmatprep.subr.bf16.mxu0 0
      %1269 = vmatpush1.bf16.msra.mxu0 %v851
      %1270 = vmatprep.subr.bf16.mxu0 0
      %1271 = vmatpush1.bf16.msra.mxu0 %v853
      %1272 = vmatprep.subr.bf16.mxu0 0
      %1273 = vmatpush1.bf16.msra.mxu0 %v855
      %1274 = vmatprep.mubr.bf16.mxu0 %v1051
      %1275 = vmatmul.mubr.bf16.gmra.mrb[0].mxu0 %v1050
      %v1276 = vpop.f32.mrb[0].mxu0
      %v1277 = vadd.f32 %v1180, %v1276
      %v1278 = vpop.f32.mrb[0].mxu0
      %v1279 = vpop.f32.mrb[0].mxu0
      %v1280 = vadd.f32 %v1183, %v1279
      %v1281 = vpop.f32.mrb[0].mxu0
      %1282 = vmatprep.mubr.bf16.mxu0 %v1056
      %1283 = vmatmul.mubr.bf16.gmra.mrb[0].mxu0 %v1055
      %v1284 = vpop.f32.mrb[0].mxu0
      %v1285 = vadd.f32 %v1188, %v1284
      %v1286 = vpop.f32.mrb[0].mxu0
      %v1287 = vpop.f32.mrb[0].mxu0
      %v1288 = vadd.f32 %v1191, %v1287
      %v1289 = vpop.f32.mrb[0].mxu0
      %1290 = vmatprep.mubr.bf16.mxu0 %v1061
      %1291 = vmatmul.mubr.bf16.gmra.mrb[0].mxu0 %v1060
      %v1292 = vpop.f32.mrb[0].mxu0
      %v1293 = vadd.f32 %v1196, %v1292
      %v1294 = vpop.f32.mrb[0].mxu0
      %v1295 = vpop.f32.mrb[0].mxu0
      %v1296 = vadd.f32 %v1199, %v1295
      %v1297 = vpop.f32.mrb[0].mxu0
      %1298 = vmatprep.mubr.bf16.mxu0 %v1066
      %1299 = vmatmul.mubr.bf16.gmra.mrb[0].mxu0 %v1065
      %v1300 = vpop.f32.mrb[0].mxu0
      %v1301 = vadd.f32 %v1204, %v1300
      %v1302 = vpop.f32.mrb[0].mxu0
      %v1303 = vpop.f32.mrb[0].mxu0
      %v1304 = vadd.f32 %v1207, %v1303
      %v1305 = vpop.f32.mrb[0].mxu0
      %1306 = vmatprep.mubr.bf16.mxu0 %v1071
      %1307 = vmatmul.mubr.bf16.gmra.mrb[0].mxu0 %v1070
      %v1308 = vpop.f32.mrb[0].mxu0
      %v1309 = vadd.f32 %v1212, %v1308
      %v1310 = vpop.f32.mrb[0].mxu0
      %v1311 = vpop.f32.mrb[0].mxu0
      %v1312 = vadd.f32 %v1215, %v1311
      %v1313 = vpop.f32.mrb[0].mxu0
      %1314 = vmatprep.mubr.bf16.mxu0 %v1076
      %1315 = vmatmul.mubr.bf16.gmra.mrb[0].mxu0 %v1075
      %v1316 = vpop.f32.mrb[0].mxu0
      %v1317 = vadd.f32 %v1220, %v1316
      %v1318 = vpop.f32.mrb[0].mxu0
      %v1319 = vpop.f32.mrb[0].mxu0
      %v1320 = vadd.f32 %v1223, %v1319
      %v1321 = vpop.f32.mrb[0].mxu0
      %1322 = vmatprep.mubr.bf16.mxu0 %v1081
      %1323 = vmatmul.mubr.bf16.gmra.mrb[0].mxu0 %v1080
      %v1324 = vpop.f32.mrb[0].mxu0
      %v1325 = vadd.f32 %v1228, %v1324
      %v1326 = vpop.f32.mrb[0].mxu0
      %v1327 = vpop.f32.mrb[0].mxu0
      %v1328 = vadd.f32 %v1231, %v1327
      %v1329 = vpop.f32.mrb[0].mxu0
      %1330 = vmatprep.mubr.bf16.mxu0 %v1086
      %1331 = vmatmul.mubr.bf16.gmra.mrb[0].mxu0 %v1085
      %v1332 = vpop.f32.mrb[0].mxu0
      %v1333 = vadd.f32 %v1236, %v1332
      %v1334 = vpop.f32.mrb[0].mxu0
      %v1335 = vpop.f32.mrb[0].mxu0
      %v1336 = vadd.f32 %v1239, %v1335
      %v1337 = vpop.f32.mrb[0].mxu0
      %1338 = vdwg.mxu0
      %1339 = vmatprep.subr.bf16.mxu0 0
      %1340 = vmatpush1.bf16.msra.mxu0 %v861
      %1341 = vmatprep.subr.bf16.mxu0 0
      %1342 = vmatpush1.bf16.msra.mxu0 %v863
      %1343 = vmatprep.subr.bf16.mxu0 0
      %1344 = vmatpush1.bf16.msra.mxu0 %v865
      %1345 = vmatprep.subr.bf16.mxu0 0
      %1346 = vmatpush1.bf16.msra.mxu0 %v867
      %1347 = vmatprep.subr.bf16.mxu0 0
      %1348 = vmatpush1.bf16.msra.mxu0 0
      %1349 = vmatprep.subr.bf16.mxu0 0
      %1350 = vmatpush1.bf16.msra.mxu0 0
      %1351 = vmatprep.subr.bf16.mxu0 0
      %1352 = vmatpush1.bf16.msra.mxu0 0
      %1353 = vmatprep.subr.bf16.mxu0 0
      %1354 = vmatpush1.bf16.msra.mxu0 0
      %1355 = vmatprep.subr.bf16.mxu0 0
      %1356 = vmatpush1.bf16.msra.mxu0 0
      %1357 = vmatprep.subr.bf16.mxu0 0
      %1358 = vmatpush1.bf16.msra.mxu0 0
      %1359 = vmatprep.subr.bf16.mxu0 0
      %1360 = vmatpush1.bf16.msra.mxu0 0
      %1361 = vmatprep.subr.bf16.mxu0 0
      %1362 = vmatpush1.bf16.msra.mxu0 0
      %1363 = vmatprep.subr.bf16.mxu0 0
      %1364 = vmatpush1.bf16.msra.mxu0 0
      %1365 = vmatprep.subr.bf16.mxu0 0
      %1366 = vmatpush1.bf16.msra.mxu0 0
      %1367 = vmatprep.subr.bf16.mxu0 0
      %1368 = vmatpush1.bf16.msra.mxu0 0
      %1369 = vmatprep.subr.bf16.mxu0 0
      %1370 = vmatpush1.bf16.msra.mxu0 0
      %1371 = vmatprep.mubr.bf16.mxu0 0
      %1372 = vmatmul.mubr.bf16.gmra.mrb[0].mxu0 %v1122
      %v1373 = vpop.f32.mrb[0].mxu0
      %v1374 = vadd.f32 %v1277, %v1373
      %v1375 = vpop.f32.mrb[0].mxu0
      %v1376 = vpop.f32.mrb[0].mxu0
      %v1377 = vadd.f32 %v1280, %v1376
      %v1378 = vpop.f32.mrb[0].mxu0
      %1379 = vmatprep.mubr.bf16.mxu0 0
      %1380 = vmatmul.mubr.bf16.gmra.mrb[0].mxu0 %v1125
      %v1381 = vpop.f32.mrb[0].mxu0
      %v1382 = vadd.f32 %v1285, %v1381
      %v1383 = vpop.f32.mrb[0].mxu0
      %v1384 = vpop.f32.mrb[0].mxu0
      %v1385 = vadd.f32 %v1288, %v1384
      %v1386 = vpop.f32.mrb[0].mxu0
      %1387 = vmatprep.mubr.bf16.mxu0 0
      %1388 = vmatmul.mubr.bf16.gmra.mrb[0].mxu0 %v1128
      %v1389 = vpop.f32.mrb[0].mxu0
      %v1390 = vadd.f32 %v1293, %v1389
      %v1391 = vpop.f32.mrb[0].mxu0
      %v1392 = vpop.f32.mrb[0].mxu0
      %v1393 = vadd.f32 %v1296, %v1392
      %v1394 = vpop.f32.mrb[0].mxu0
      %1395 = vmatprep.mubr.bf16.mxu0 0
      %1396 = vmatmul.mubr.bf16.gmra.mrb[0].mxu0 %v1131
      %v1397 = vpop.f32.mrb[0].mxu0
      %v1398 = vadd.f32 %v1301, %v1397
      %v1399 = vpop.f32.mrb[0].mxu0
      %v1400 = vpop.f32.mrb[0].mxu0
      %v1401 = vadd.f32 %v1304, %v1400
      %v1402 = vpop.f32.mrb[0].mxu0
      %1403 = vmatprep.mubr.bf16.mxu0 0
      %1404 = vmatmul.mubr.bf16.gmra.mrb[0].mxu0 %v1134
      %v1405 = vpop.f32.mrb[0].mxu0
      %v1406 = vadd.f32 %v1309, %v1405
      %v1407 = vpop.f32.mrb[0].mxu0
      %v1408 = vpop.f32.mrb[0].mxu0
      %v1409 = vadd.f32 %v1312, %v1408
      %v1410 = vpop.f32.mrb[0].mxu0
      %1411 = vmatprep.mubr.bf16.mxu0 0
      %1412 = vmatmul.mubr.bf16.gmra.mrb[0].mxu0 %v1137
      %v1413 = vpop.f32.mrb[0].mxu0
      %v1414 = vadd.f32 %v1317, %v1413
      %v1415 = vpop.f32.mrb[0].mxu0
      %v1416 = vpop.f32.mrb[0].mxu0
      %v1417 = vadd.f32 %v1320, %v1416
      %v1418 = vpop.f32.mrb[0].mxu0
      %1419 = vmatprep.mubr.bf16.mxu0 0
      %1420 = vmatmul.mubr.bf16.gmra.mrb[0].mxu0 %v1140
      %v1421 = vpop.f32.mrb[0].mxu0
      %v1422 = vadd.f32 %v1325, %v1421
      %v1423 = vpop.f32.mrb[0].mxu0
      %v1424 = vpop.f32.mrb[0].mxu0
      %v1425 = vadd.f32 %v1328, %v1424
      %v1426 = vpop.f32.mrb[0].mxu0
      %1427 = vmatprep.mubr.bf16.mxu0 0
      %1428 = vmatmul.mubr.bf16.gmra.mrb[0].mxu0 %v1143
      %v1429 = vpop.f32.mrb[0].mxu0
      %v1430 = vadd.f32 %v1333, %v1429
      %v1431 = vpop.f32.mrb[0].mxu0
      %v1432 = vpop.f32.mrb[0].mxu0
      %v1433 = vadd.f32 %v1336, %v1432
      %v1434 = vpop.f32.mrb[0].mxu0
      %1435 = vdwg.mxu0
      %v1436 = vmax.f32 %v1374, %v1390
      %v1437 = vmax.f32 %v1377, %v1393
      %v1438 = vmax.f32 %v1382, %v1398
      %v1439 = vmax.f32 %v1385, %v1401
      %v1440 = vmax.f32 %v1406, %v1422
      %v1441 = vmax.f32 %v1409, %v1425
      %v1442 = vmax.f32 %v1414, %v1430
      %v1443 = vmax.f32 %v1417, %v1433
      %v1444 = vmax.f32 %v1436, %v1440
      %v1445 = vmax.f32 %v1437, %v1441
      %v1446 = vmax.f32 %v1438, %v1442
      %v1447 = vmax.f32 %v1439, %v1443
      %v1448 = vld [vmem:[%s5] sm:$0xff]
      %v1449 = vld [vmem:[%s5 + $0x8] sm:$0xff]
      %v1450 = vld [vmem:[%s5 + $0x10] sm:$0xff]
      %v1451 = vld [vmem:[%s5 + $0x18] sm:$0xff]
      %1453 = vset.pattern.permute.xlu0 0
      %1454 = vperm.xlu0 %1453, %v1448
      %v1455 = vpop.permute.xlu0 %1454
      %1458 = vset.pattern.permute.xlu0 0
      %1459 = vperm.xlu0 %1458, %v1449
      %v1460 = vpop.permute.xlu0 %1459
      %1463 = vset.pattern.permute.xlu0 0
      %1464 = vperm.xlu0 %1463, %v1450
      %v1465 = vpop.permute.xlu0 %1464
      %1468 = vset.pattern.permute.xlu0 0
      %1469 = vperm.xlu0 %1468, %v1451
      %v1470 = vpop.permute.xlu0 %1469
      %v1472 = vadd.f32 %v1444, %v1455
      %v1473 = vadd.f32 %v1445, %v1460
      %v1474 = vadd.f32 %v1446, %v1465
      %v1475 = vadd.f32 %v1447, %v1470
      %v1476 = vmax.f32 %v1472, 0.0
      %v1477 = vmax.f32 %v1473, 0.0
      %v1478 = vmax.f32 %v1474, 0.0
      %v1479 = vmax.f32 %v1475, 0.0
      %v1480 = vld [vmem:[%s6] sm:$0xf]
      %v1481 = vld [vmem:[%s6 + $0x4] sm:$0xf]
      %v1482 = vld [vmem:[%s6 + $0x8] sm:$0xf]
      %v1483 = vld [vmem:[%s6 + $0xc] sm:$0xf]
      %v1484 = vunpack.c.l.bf16 %v1480
      %v1485 = vunpack.c.l.bf16 %v1481
      %v1486 = vunpack.c.l.bf16 %v1482
      %v1487 = vunpack.c.l.bf16 %v1483
      %v1488 = vmul.f32 %v1484, %v1476
      %v1489 = vmul.f32 %v1485, %v1477
      %v1490 = vmul.f32 %v1486, %v1478
      %v1491 = vmul.f32 %v1487, %v1479
      %vm1492 = vcmask 195584
      %v1493 = vsel %vm1492, %v1488, 0.0
      %1494 = vadd.xlane.f32.xlu0 %v1493
      %v1495 = vpop.xlane.xlu0 %1494
      %v1496 = vsel %vm1492, %v1489, 0.0
      %1497 = vadd.xlane.f32.xlu0 %v1496
      %v1498 = vpop.xlane.xlu0 %1497
      %v1499 = vsel %vm1492, %v1490, 0.0
      %1500 = vadd.xlane.f32.xlu0 %v1499
      %v1501 = vpop.xlane.xlu0 %1500
      %v1502 = vsel %vm1492, %v1491, 0.0
      %1503 = vadd.xlane.f32.xlu0 %v1502
      %v1504 = vpop.xlane.xlu0 %1503
      %v1505 = vadd.f32 %v1495, %v1498
      %v1506 = vadd.f32 %v1505, %v1501
      %v1507 = vadd.f32 %v1506, %v1504
      %v1508 = vrot.slane %v1507, 4
      %v1509 = vadd.f32 %v1507, %v1508
      %v1510 = vrot.slane %v1509, 2
      %v1511 = vadd.f32 %v1509, %v1510
      %v1512 = vrot.slane %v1511, 1
      %v1513 = vadd.f32 %v1511, %v1512
      %s1514 = scalar_lea.vmem %s6, 16
      %v1515 = vld [vmem:[%s1514] sm:$0xf]
      %v1516 = vld [vmem:[%s1514 + $0x4] sm:$0xf]
      %v1517 = vld [vmem:[%s1514 + $0x8] sm:$0xf]
      %v1518 = vld [vmem:[%s1514 + $0xc] sm:$0xf]
      %v1519 = vunpack.c.l.bf16 %v1515
      %v1520 = vunpack.c.l.bf16 %v1516
      %v1521 = vunpack.c.l.bf16 %v1517
      %v1522 = vunpack.c.l.bf16 %v1518
      %v1523 = vmul.f32 %v1519, %v1476
      %v1524 = vmul.f32 %v1520, %v1477
      %v1525 = vmul.f32 %v1521, %v1478
      %v1526 = vmul.f32 %v1522, %v1479
      %v1527 = vsel %vm1492, %v1523, 0.0
      %1528 = vadd.xlane.f32.xlu0 %v1527
      %v1529 = vpop.xlane.xlu0 %1528
      %v1530 = vsel %vm1492, %v1524, 0.0
      %1531 = vadd.xlane.f32.xlu0 %v1530
      %v1532 = vpop.xlane.xlu0 %1531
      %v1533 = vsel %vm1492, %v1525, 0.0
      %1534 = vadd.xlane.f32.xlu0 %v1533
      %v1535 = vpop.xlane.xlu0 %1534
      %v1536 = vsel %vm1492, %v1526, 0.0
      %1537 = vadd.xlane.f32.xlu0 %v1536
      %v1538 = vpop.xlane.xlu0 %1537
      %v1539 = vadd.f32 %v1529, %v1532
      %v1540 = vadd.f32 %v1539, %v1535
      %v1541 = vadd.f32 %v1540, %v1538
      %v1542 = vrot.slane %v1541, 4
      %v1543 = vadd.f32 %v1541, %v1542
      %v1544 = vrot.slane %v1543, 2
      %v1545 = vadd.f32 %v1543, %v1544
      %v1546 = vrot.slane %v1545, 1
      %v1547 = vadd.f32 %v1545, %v1546
      %s1548 = scalar_lea.vmem %s6, 32
      %v1549 = vld [vmem:[%s1548] sm:$0xf]
      %v1550 = vld [vmem:[%s1548 + $0x4] sm:$0xf]
      %v1551 = vld [vmem:[%s1548 + $0x8] sm:$0xf]
      %v1552 = vld [vmem:[%s1548 + $0xc] sm:$0xf]
      %v1553 = vunpack.c.l.bf16 %v1549
      %v1554 = vunpack.c.l.bf16 %v1550
      %v1555 = vunpack.c.l.bf16 %v1551
      %v1556 = vunpack.c.l.bf16 %v1552
      %v1557 = vmul.f32 %v1553, %v1476
      %v1558 = vmul.f32 %v1554, %v1477
      %v1559 = vmul.f32 %v1555, %v1478
      %v1560 = vmul.f32 %v1556, %v1479
      %v1561 = vsel %vm1492, %v1557, 0.0
      %1562 = vadd.xlane.f32.xlu0 %v1561
      %v1563 = vpop.xlane.xlu0 %1562
      %v1564 = vsel %vm1492, %v1558, 0.0
      %1565 = vadd.xlane.f32.xlu0 %v1564
      %v1566 = vpop.xlane.xlu0 %1565
      %v1567 = vsel %vm1492, %v1559, 0.0
      %1568 = vadd.xlane.f32.xlu0 %v1567
      %v1569 = vpop.xlane.xlu0 %1568
      %v1570 = vsel %vm1492, %v1560, 0.0
      %1571 = vadd.xlane.f32.xlu0 %v1570
      %v1572 = vpop.xlane.xlu0 %1571
      %v1573 = vadd.f32 %v1563, %v1566
      %v1574 = vadd.f32 %v1573, %v1569
      %v1575 = vadd.f32 %v1574, %v1572
      %v1576 = vrot.slane %v1575, 4
      %v1577 = vadd.f32 %v1575, %v1576
      %v1578 = vrot.slane %v1577, 2
      %v1579 = vadd.f32 %v1577, %v1578
      %v1580 = vrot.slane %v1579, 1
      %v1581 = vadd.f32 %v1579, %v1580
      %vm1582 = vcmask 1040384
      %v1583 = vsel %vm1582, %v1513, %v1547
      %v1584 = vsel %vm498, %v1583, %v1581
      %v1585 = vld [vmem:[%s7] sm:$0x7]
      %v1586 = vadd.f32 %v1584, %v1585
      %vm1587 = vcmask 2048
      %1588 = vst.msk [vmem:[%s392] sm:$0x7] %vm1587, %v1586
      %v1589 = vmax.f32 %v1586, 0.0
      %v1590 = vld [vmem:[%s8] sm:$0x7]
      %v1591 = vmul.f32 %v1589, %v1590
      %v1592 = vsel %vm1587, %v1591, 0.0
      %v1593 = vrot.slane %v1592, 4
      %v1594 = vadd.f32 %v1592, %v1593
      %v1595 = vrot.slane %v1594, 2
      %v1596 = vadd.f32 %v1594, %v1595
      %v1597 = vrot.slane %v1596, 1
      %v1598 = vadd.f32 %v1596, %v1597
      %v1599 = vld [vmem:[#allocation3] sm:$0x1]
      %v1600 = vadd.f32 %v1598, %v1599
      %vm1601 = vcmask 0
      %1602 = vst.msk [vmem:[%s395] sm:$0x1] %vm1601, %v1600
      %p1603 = scmp.lt.s32.totalorder %s25, 1
      %s1604 = scalar_select %p1603, %s25, 1
      %s1605 = smul.addr %s1604, 4
      %s1606 = scalar_lea.vmem %s10, %s1605
      %p1607 = scmp.lt.s32.totalorder %s25, 1
      %s1608 = scalar_select %p1607, %s25, 1
      %s1609 = scalar_lea.vmem %s11, %s1608
      // Predicated region
      $region61: #{multi_head_convnet_forward.1} parent=59 // pred_check
        %p1610 = pneg %p258
      $region62: #{multi_head_convnet_forward.1} parent=59 // pred_check_branch
        %1612 = sbr.rel (%p1610) target = $region64
      $region63: #{multi_head_convnet_forward.1} parent=59 // pred_region
        _
      $region64: #{multi_head_convnet_forward.1} parent=59 // pred_fallthru
        _
      // Predicated region
      $region65: #{multi_head_convnet_forward.1} parent=59 // pred_check
        %p1613 = pneg %p284
      $region66: #{multi_head_convnet_forward.1} parent=59 // pred_check_branch
        %1615 = sbr.rel (%p1613) target = $region68
      $region67: #{multi_head_convnet_forward.1} parent=59 // pred_region
        _
      $region68: #{multi_head_convnet_forward.1} parent=59 // pred_fallthru
        _
    $region60: #{multi_head_convnet_forward.1} parent=5 // pred_fallthru
      _
    %p1616 = scmp.le.s32.totalorder 2, %s20
    // Predicated region
    $region69: #{multi_head_convnet_forward.1} parent=5 // pred_check
      %p1617 = pneg %p1616
    $region70: #{multi_head_convnet_forward.1} parent=5 // pred_check_branch
      %1619 = sbr.rel (%p1617) target = $region72
    $region71: #{multi_head_convnet_forward.1} parent=5 // pred_region
      %s1620 = ssub.s32 %s20, 2
      // Predicated region
      $region73: #{multi_head_convnet_forward.1} parent=71 // pred_check
        %p1621 = pneg %p264
      $region74: #{multi_head_convnet_forward.1} parent=71 // pred_check_branch
        %1623 = sbr.rel (%p1621) target = $region76
      $region75: #{multi_head_convnet_forward.1} parent=71 // pred_region
        %p1624 = scmp.lt.s32.totalorder %s26, 1
        %s1625 = scalar_select %p1624, %s26, 1
        %s1626 = smul.addr %s1625, 4
        %s1627 = scalar_lea.vmem %s10, %s1626
      $region76: #{multi_head_convnet_forward.1} parent=71 // pred_fallthru
        _
      // Predicated region
      $region77: #{multi_head_convnet_forward.1} parent=71 // pred_check
        %p1628 = pneg %p290
      $region78: #{multi_head_convnet_forward.1} parent=71 // pred_check_branch
        %1630 = sbr.rel (%p1628) target = $region80
      $region79: #{multi_head_convnet_forward.1} parent=71 // pred_region
        %p1631 = scmp.lt.s32.totalorder %s26, 1
        %s1632 = scalar_select %p1631, %s26, 1
        %s1633 = scalar_lea.vmem %s11, %s1632
      $region80: #{multi_head_convnet_forward.1} parent=71 // pred_fallthru
        _
    $region72: #{multi_head_convnet_forward.1} parent=5 // pred_fallthru
      _
  $region6: #{multi_head_convnet_forward.1} parent=0 // loop_footer
    %s24 = sadd.s32 1, %s20
  $region7: #{multi_head_convnet_forward.1} parent=0 // loop_footer_branch
    %19 = sbr.rel target = $region3
  $region8: #{multi_head_convnet_forward.1} parent=0 // loop_exit
    _

</llo_original>
